<compile_context>
chip_gen: v6e
topology: v6e:2x2x1
jax: 0.10.0
libtpu: 0.0.40
codegen_flags: <defaults>
</compile_context>

<pallas_src>
import jax
import jax.numpy as jnp
from jax import lax
from jax.experimental import pallas as pl
from jax.experimental.pallas import tpu as pltpu

# conv2 tap packing constants (shared by init_params and the conv2 wrapper)
CONV2_K = 4000     # real taps of Conv1d(40, 40, 4000)
CONV2_KP = 4096    # taps zero-padded to a multiple of the chunk size
CONV2_KB = 512     # taps processed per grid step (reduction chunk)
CONV2_G = 16       # taps fused per MXU issue  -> contraction K = 40*G = 640


# --------------------------- AudioNet: conv1 + pool1 --------------------------
# Conv1d(1, 40, 80) on input padded (40, 39), fused with MaxPool1d(2).
# The wrapper builds an 81-row polyphase im2col (even-phase shifts 0..40 then
# odd-phase shifts 0..39), so the kernel is just two MXU matmuls + a max.
def conv1_pool1_kernel(xc_ref, we_ref, wo_ref, b_ref, o_ref):
    xc = xc_ref[0]                                              # (81, lh)
    oe = jnp.dot(we_ref[...], xc, preferred_element_type=jnp.float32) + b_ref[...]
    oo = jnp.dot(wo_ref[...], xc, preferred_element_type=jnp.float32) + b_ref[...]
    o_ref[0] = jnp.maximum(oe, oo)                              # MaxPool1d(2)


# --------------------- AudioNet: conv2 + pool2 (over channels) ----------------
# Conv1d(40, 40, 4000) on input padded (2000, 1999); taps padded to 4096 and
# processed in KB-sized chunks along the reduction grid axis; within a chunk,
# G adjacent tap matrices are fused into one (40, 40*G) bf16 weight block
# contracted against a shift-stacked operand.  Epilogue does the permute +
# MaxPool1d(10) (max over channel groups of 10).
def conv2_pool2_kernel(x_ref, w_ref, b_ref, o_ref, acc_ref):
    tt = pl.program_id(1)
    kc = pl.program_id(2)
    lt = acc_ref.shape[1]                      # output time tile (lanes)
    ng = w_ref.shape[1]                        # tap groups per chunk
    g_taps = w_ref.shape[3] // 40              # taps per group (G)
    kb = ng * g_taps                           # taps per chunk

    @pl.when(kc == 0)
    def _():
        acc_ref[...] = jnp.broadcast_to(b_ref[...], acc_ref.shape)

    base = tt * lt + kc * kb
    if lt % 128 == 0 and kb % 128 == 0:        # static alignment hint
        base = pl.multiple_of(base, 128)
    xwin = x_ref[0, :, pl.ds(base, lt + kb)]   # (40, lt+kb) f32

    # Shift-stacked operand shared by every tap group in this chunk:
    #   xr[r*40 + ci, v] = xwin[ci, r + v],   r = 0..G-1
    xr = jnp.concatenate(
        [xwin[:, r:r + lt + kb - g_taps] for r in range(g_taps)], axis=0)
    xr = xr.astype(jnp.bfloat16)               # (40*G, lt+kb-G)

    acc = acc_ref[...]
    for g in range(ng):                        # bf16 MXU matmuls, K = 40*G = 640
        xg = xr[:, g * g_taps: g * g_taps + lt]              # (40*G, lt)
        acc = acc + jnp.dot(w_ref[0, g], xg,
                            preferred_element_type=jnp.float32)
    acc_ref[...] = acc

    @pl.when(kc == pl.num_programs(2) - 1)
    def _():
        a = acc_ref[...].reshape(4, 10, lt)    # channel groups of 10
        o_ref[0] = jnp.max(a, axis=1)          # permute + MaxPool1d(10)


# ---------------------- LSTM layer-0 input projection -------------------------
# Hoisted out of the recurrent loop: one (T*N, 1280) @ (1280, 1024) bf16 matmul
# with the fused bias (b_ih0 + b_hh0) added once.
def lstm_inproj_kernel(x_ref, w_ref, b_ref, o_ref):
    x = x_ref[...].astype(jnp.bfloat16)
    o_ref[...] = (jnp.dot(x, w_ref[...], preferred_element_type=jnp.float32)
                  + b_ref[...])


# --------------------------- LSTM recurrence + heads --------------------------
# 2-layer LSTM(1280, 256).  Packed-sequence semantics: the LSTM is causal and
# only the output at t = lengths-1 is consumed, so running the padded sequence
# is equivalent; the gather f[arange(N), lengths-1] is fused in-kernel, and the
# fc_emo/fc_sex heads are applied in the epilogue of the last grid step.
def lstm_heads_kernel(g0_ref, len_ref, whh0_ref, wih1_ref, whh1_ref, b1_ref,
                      hw_ref, hb_ref, o_ref,
                      h0_ref, c0_ref, h1_ref, c1_ref, fl_ref):
    blk = pl.program_id(0)
    tt = g0_ref.shape[0]                       # time steps per grid step
    h = h0_ref.shape[1]

    @pl.when(blk == 0)
    def _():
        h0_ref[...] = jnp.zeros_like(h0_ref)
        c0_ref[...] = jnp.zeros_like(c0_ref)
        h1_ref[...] = jnp.zeros_like(h1_ref)
        c1_ref[...] = jnp.zeros_like(c1_ref)
        fl_ref[...] = jnp.zeros_like(fl_ref)

    def gates(g, c_prev):                      # PyTorch gate order i, f, g, o
        i_g = jax.nn.sigmoid(g[:, 0 * h:1 * h])
        f_g = jax.nn.sigmoid(g[:, 1 * h:2 * h])
        g_g = jnp.tanh(g[:, 2 * h:3 * h])
        o_g = jax.nn.sigmoid(g[:, 3 * h:4 * h])
        c_new = f_g * c_prev + i_g * g_g
        h_new = o_g * jnp.tanh(c_new)
        return h_new, c_new

    def step(s, carry):
        # layer 0: x@Wih0 + (b_ih0 + b_hh0) already hoisted into g0.
        g_l0 = g0_ref[s] + jnp.dot(h0_ref[...].astype(jnp.bfloat16),
                                   whh0_ref[...],
                                   preferred_element_type=jnp.float32)
        h0_new, c0_new = gates(g_l0, c0_ref[...])
        h0_ref[...] = h0_new
        c0_ref[...] = c0_new

        g_l1 = (jnp.dot(h0_new.astype(jnp.bfloat16), wih1_ref[...],
                        preferred_element_type=jnp.float32)
                + jnp.dot(h1_ref[...].astype(jnp.bfloat16), whh1_ref[...],
                          preferred_element_type=jnp.float32)
                + b1_ref[...])
        h1_new, c1_new = gates(g_l1, c1_ref[...])
        h1_ref[...] = h1_new
        c1_ref[...] = c1_new

        # f[arange(N), lengths-1]: capture layer-1 output when t+1 == length.
        keep = len_ref[...] == (blk * tt + s + 1)            # (N, 1)
        fl_ref[...] = jnp.where(keep, h1_new, fl_ref[...])
        return carry

    lax.fori_loop(0, tt, step, 0, unroll=True)

    @pl.when(blk == pl.num_programs(0) - 1)
    def _():
        # fused fc_emo / fc_sex (weights packed into one lane-dense 128-col slab)
        o_ref[...] = (jnp.dot(fl_ref[...], hw_ref[...],
                              preferred_element_type=jnp.float32) + hb_ref[...])


# --------------------------------- wrappers -----------------------------------
def _pick_time_tile(lh, cap=1024):
    """Largest multiple of 128 (<= cap) dividing lh; falls back to lh."""
    lt = min(cap, lh)
    lt -= lt % 128
    while lt >= 128:
        if lh % lt == 0:
            return lt
        lt -= 128
    return lh


def audionet_forward(x_a, p):
    n, _, l = x_a.shape
    lh = l // 2
    assert l % 2 == 0 and (lh * 4) % 1280 == 0, "audio length must be 640*T"

    # ---- conv1 + pool1: polyphase im2col (layout prep) + MXU matmuls ----
    xpad = jnp.pad(x_a[:, 0, :], ((0, 0), (40, 39)))         # F.pad(x_a, (40, 39))
    xe = xpad[:, 0::2]                                       # (n, lh+40) even phase
    xo = xpad[:, 1::2]                                       # (n, lh+39) odd phase
    xc = jnp.stack([xe[:, m:m + lh] for m in range(41)]
                   + [xo[:, m:m + lh] for m in range(40)], axis=1)   # (n, 81, lh)

    pooled1 = pl.pallas_call(
        conv1_pool1_kernel,
        out_shape=jax.ShapeDtypeStruct((n, 40, lh), jnp.float32),
        grid=(n,),
        in_specs=[
            pl.BlockSpec((1, 81, lh), lambda i: (i, 0, 0)),
            pl.BlockSpec((40, 81), lambda i: (0, 0)),
            pl.BlockSpec((40, 81), lambda i: (0, 0)),
            pl.BlockSpec((40, 1), lambda i: (0, 0)),
        ],
        out_specs=pl.BlockSpec((1, 40, lh), lambda i: (i, 0, 0)),
        compiler_params=pltpu.CompilerParams(dimension_semantics=("parallel",)),
    )(xc, p["conv1_we"], p["conv1_wo"], p["conv1_b"])

    # ---- conv2 + pool2: tap-grouped bf16 matmuls, time-tiled ----
    kp, kb, g = CONV2_KP, CONV2_KB, CONV2_G
    nc, ng = kp // kb, kb // g
    lt = _pick_time_tile(lh)
    ntt = lh // lt
    # F.pad(., (2000, 1999)) plus extra right zeros covering the zero-padded taps.
    xpad2 = jnp.pad(pooled1, ((0, 0), (0, 0), (2000, kp - 2000)))

    pooled2 = pl.pallas_call(
        conv2_pool2_kernel,
        out_shape=jax.ShapeDtypeStruct((n, 4, lh), jnp.float32),
        grid=(n, ntt, nc),
        in_specs=[
            pl.BlockSpec((1, 40, lh + kp), lambda b, t, k: (b, 0, 0)),
            pl.BlockSpec((1, ng, 40, g * 40), lambda b, t, k: (k, 0, 0, 0)),
            pl.BlockSpec((40, 1), lambda b, t, k: (0, 0)),
        ],
        out_specs=pl.BlockSpec((1, 4, lt), lambda b, t, k: (b, 0, t)),
        scratch_shapes=[pltpu.VMEM((40, lt), jnp.float32)],
        compiler_params=pltpu.CompilerParams(
            dimension_semantics=("parallel", "parallel", "arbitrary"),
            vmem_limit_bytes=32 * 1024 * 1024),
    )(xpad2, p["conv2_w"], p["conv2_b"])

    t_steps = (lh * 4) // 1280
    # permute(0,2,1) (channel pooling already applied in-kernel) + view(n,-1,1280)
    return jnp.transpose(pooled2, (0, 2, 1)).reshape(n, t_steps, 1280)


def lstm_last_forward(f, lengths, p, tt_block=8):
    n, t, d = f.shape
    h = p["lstm_whh0"].shape[0]
    no = p["head_w"].shape[1]

    # pack_padded_sequence would reject lengths outside [1, T]; check if concrete.
    try:
        lmin, lmax = int(jnp.min(lengths)), int(jnp.max(lengths))
        assert 1 <= lmin and lmax <= t, "lengths must lie in [1, T]"
    except (jax.errors.ConcretizationTypeError,
            jax.errors.TracerIntegerConversionError):
        pass

    # ---- hoisted layer-0 input projection: one (T*N, 1280)@(1280, 1024) matmul
    f_tm = jnp.transpose(f, (1, 0, 2)).reshape(t * n, d)     # time-major
    g0 = pl.pallas_call(
        lstm_inproj_kernel,
        out_shape=jax.ShapeDtypeStruct((t * n, 4 * h), jnp.float32),
        grid=(1,),
        in_specs=[
            pl.BlockSpec((t * n, d), lambda i: (0, 0)),
            pl.BlockSpec((d, 4 * h), lambda i: (0, 0)),
            pl.BlockSpec((1, 4 * h), lambda i: (0, 0)),
        ],
        out_specs=pl.BlockSpec((t * n, 4 * h), lambda i: (0, 0)),
        compiler_params=pltpu.CompilerParams(dimension_semantics=("arbitrary",)),
    )(f_tm, p["lstm_wih0"], p["lstm_b0"]).reshape(t, n, 4 * h)

    # ---- time-blocked recurrence + fused heads ----
    tt = min(tt_block, t)
    nb = pl.cdiv(t, tt)
    t_pad = nb * tt
    if t_pad > t:
        # Padded steps are never captured: keep fires only when t+1 == length <= T.
        g0 = jnp.pad(g0, ((0, t_pad - t), (0, 0), (0, 0)))
    len_v = lengths.reshape(n, 1).astype(jnp.int32)

    return pl.pallas_call(
        lstm_heads_kernel,
        out_shape=jax.ShapeDtypeStruct((n, no), jnp.float32),
        grid=(nb,),
        in_specs=[
            pl.BlockSpec((tt, n, 4 * h), lambda b: (b, 0, 0)),
            pl.BlockSpec((n, 1), lambda b: (0, 0)),
            pl.BlockSpec((h, 4 * h), lambda b: (0, 0)),
            pl.BlockSpec((h, 4 * h), lambda b: (0, 0)),
            pl.BlockSpec((h, 4 * h), lambda b: (0, 0)),
            pl.BlockSpec((1, 4 * h), lambda b: (0, 0)),
            pl.BlockSpec((h, no), lambda b: (0, 0)),
            pl.BlockSpec((1, no), lambda b: (0, 0)),
        ],
        out_specs=pl.BlockSpec((n, no), lambda b: (0, 0)),
        scratch_shapes=[pltpu.VMEM((n, h), jnp.float32) for _ in range(5)],
        compiler_params=pltpu.CompilerParams(dimension_semantics=("arbitrary",)),
    )(g0, len_v, p["lstm_whh0"], p["lstm_wih1"], p["lstm_whh1"], p["lstm_b1"],
      p["head_w"], p["head_b"])


def multinet_forward(x_v, x_a, lengths, params, n_emo=4, n_sex=2):
    assert x_v.shape[0] == x_a.shape[0]
    # TODO(synk): only modal='audio'; VideoNet (ResNet50) branch not implemented.
    f = audionet_forward(x_a, params)                        # (N, T, 1280)
    # nn.Dropout -> inference identity; fc_emo/fc_sex fused into LSTM epilogue.
    out = lstm_last_forward(f, lengths, params)              # (N, 128)
    return out[:, :n_emo], out[:, n_emo:n_emo + n_sex]


# --------------------------- deterministic params -----------------------------
def init_params(key, lstm_h=256, n_out=(4, 2)):
    ks = jax.random.split(key, 16)
    p = {}

    # Conv1d(1, 40, 80): repacked into the polyphase form matching the 81-row
    # im2col [even shifts 0..40 | odd shifts 0..39].
    w1 = 0.05 * jax.random.normal(ks[0], (40, 80), jnp.float32)
    we, wo = w1[:, 0::2], w1[:, 1::2]                        # even / odd taps
    z = jnp.zeros((40, 1), jnp.float32)
    p["conv1_we"] = jnp.concatenate([we, z, wo], axis=1)     # conv out at even t
    p["conv1_wo"] = jnp.concatenate([z, wo, we], axis=1)     # conv out at odd t
    p["conv1_b"] = 0.05 * jax.random.normal(ks[1], (40, 1), jnp.float32)

    # Conv1d(40, 40, 4000): taps padded 4000->4096 and repacked lane-dense as
    # (chunk, group, c_out, G*c_in) bf16 blocks so each MXU issue has K=640.
    kp, kb, g = CONV2_KP, CONV2_KB, CONV2_G
    nc, ng = kp // kb, kb // g
    w2 = 0.005 * jax.random.normal(ks[2], (40, 40, CONV2_K), jnp.float32)
    w2 = jnp.pad(w2, ((0, 0), (0, 0), (0, kp - CONV2_K)))
    wt = jnp.transpose(w2, (2, 0, 1)).reshape(nc, ng, g, 40, 40)  # (kc,g,r,co,ci)
    wt = jnp.transpose(wt, (0, 1, 3, 2, 4)).reshape(nc, ng, 40, g * 40)
    p["conv2_w"] = wt.astype(jnp.bfloat16)
    p["conv2_b"] = 0.05 * jax.random.normal(ks[3], (40, 1), jnp.float32)

    # nn.LSTM(1280, 256, 2): weights stored transposed (in, 4h) in bf16, biases
    # b_ih + b_hh fused in f32.  Gate order i, f, g, o.
    h = lstm_h
    p["lstm_wih0"] = (0.02 * jax.random.normal(ks[4], (1280, 4 * h), jnp.float32)
                      ).astype(jnp.bfloat16)
    p["lstm_whh0"] = (0.04 * jax.random.normal(ks[5], (h, 4 * h), jnp.float32)
                      ).astype(jnp.bfloat16)
    p["lstm_b0"] = 0.05 * jax.random.normal(ks[6], (1, 4 * h), jnp.float32)
    p["lstm_wih1"] = (0.04 * jax.random.normal(ks[7], (h, 4 * h), jnp.float32)
                      ).astype(jnp.bfloat16)
    p["lstm_whh1"] = (0.04 * jax.random.normal(ks[8], (h, 4 * h), jnp.float32)
                      ).astype(jnp.bfloat16)
    p["lstm_b1"] = 0.05 * jax.random.normal(ks[9], (1, 4 * h), jnp.float32)

    # fc_emo / fc_sex packed into one lane-dense (256, 128) head.
    w_emo = 0.1 * jax.random.normal(ks[10], (h, n_out[0]), jnp.float32)
    b_emo = 0.1 * jax.random.normal(ks[11], (1, n_out[0]), jnp.float32)
    w_sex = 0.1 * jax.random.normal(ks[12], (h, n_out[1]), jnp.float32)
    b_sex = 0.1 * jax.random.normal(ks[13], (1, n_out[1]), jnp.float32)
    head_w = jnp.zeros((h, 128), jnp.float32)
    head_w = head_w.at[:, :n_out[0]].set(w_emo)
    head_w = head_w.at[:, n_out[0]:n_out[0] + n_out[1]].set(w_sex)
    head_b = jnp.zeros((1, 128), jnp.float32)
    head_b = head_b.at[:, :n_out[0]].set(b_emo)
    head_b = head_b.at[:, n_out[0]:n_out[0] + n_out[1]].set(b_sex)
    p["head_w"], p["head_b"] = head_w, head_b
    return p


if __name__ == "__main__":
    key = jax.random.PRNGKey(0)
    k_p, k_a, k_v = jax.random.split(key, 3)
    params = init_params(k_p)

    N = 2
    T = 4                          # LSTM sequence length
    L = 640 * T                    # audio length; view(n, -1, 1280) needs L = 640*T
    x_a = jax.random.normal(k_a, (N, 1, L), jnp.float32)
    x_v = jax.random.normal(k_v, (N, 3 * T, 96, 96), jnp.float32)  # unused (audio modality)
    lengths = jnp.array([4, 2], jnp.int32)   # sorted descending (pack_padded_sequence)

    out_emo, out_sex = multinet_forward(x_v, x_a, lengths, params)
    jax.block_until_ready((out_emo, out_sex))
    assert out_emo.shape == (N, 4) and out_sex.shape == (N, 2)
    assert bool(jnp.all(jnp.isfinite(out_emo))) and bool(jnp.all(jnp.isfinite(out_sex)))
    print("KERNEL_OK")
</pallas_src>

<mosaic_0001>
module attributes {stable_mosaic.version = 11 : i64} {
  func.func @conv1_pool1_kernel(%arg0: i32, %arg1: memref<1x81x1280xf32, #tpu.memory_space<vmem>>, %arg2: memref<40x81xf32, #tpu.memory_space<vmem>>, %arg3: memref<40x81xf32, #tpu.memory_space<vmem>>, %arg4: memref<40x1xf32, #tpu.memory_space<vmem>>, %arg5: memref<1x40x1280xf32, #tpu.memory_space<vmem>>) attributes {dimension_semantics = [#tpu.dimension_semantics<parallel>], iteration_bounds = array<i64: 2>, scalar_prefetch = 0 : i64, scratch_operands = 0 : i64, tpu.core_type = #tpu.core_type<tc>, window_params = [{transform_indices = @transform_0, window_bounds = array<i64: 1, 81, 1280>}, {pipeline_mode = #tpu.pipeline_mode<synchronous>, transform_indices = @transform_1, window_bounds = array<i64: 40, 81>}, {pipeline_mode = #tpu.pipeline_mode<synchronous>, transform_indices = @transform_2, window_bounds = array<i64: 40, 81>}, {pipeline_mode = #tpu.pipeline_mode<synchronous>, transform_indices = @transform_3, window_bounds = array<i64: 40, 1>}, {transform_indices = @transform_4, window_bounds = array<i64: 1, 40, 1280>}]} {
    %c0 = arith.constant 0 : index
    %c0_0 = arith.constant 0 : index
    %c0_1 = arith.constant 0 : index
    %0 = vector.load %arg1[%c0, %c0_0, %c0_1] : memref<1x81x1280xf32, #tpu.memory_space<vmem>>, vector<1x81x1280xf32>
    %1 = vector.shape_cast %0 : vector<1x81x1280xf32> to vector<81x1280xf32>
    %c0_2 = arith.constant 0 : index
    %c0_3 = arith.constant 0 : index
    %2 = vector.load %arg2[%c0_2, %c0_3] : memref<40x81xf32, #tpu.memory_space<vmem>>, vector<40x81xf32>
    %cst = arith.constant dense<0.000000e+00> : vector<40x1280xf32>
    %3 = tpu.matmul %2, %1, %cst {dimension_numbers = #tpu.dot_dimension_numbers<[1], [0], [0], [1], [0, 0, 1, 1], [], []>} : vector<40x81xf32>, vector<81x1280xf32>, vector<40x1280xf32> -> vector<40x1280xf32>
    %c0_4 = arith.constant 0 : index
    %c0_5 = arith.constant 0 : index
    %4 = vector.load %arg4[%c0_4, %c0_5] : memref<40x1xf32, #tpu.memory_space<vmem>>, vector<40x1xf32>
    %5 = vector.broadcast %4 : vector<40x1xf32> to vector<40x1280xf32>
    %6 = arith.addf %3, %5 : vector<40x1280xf32>
    %c0_6 = arith.constant 0 : index
    %c0_7 = arith.constant 0 : index
    %7 = vector.load %arg3[%c0_6, %c0_7] : memref<40x81xf32, #tpu.memory_space<vmem>>, vector<40x81xf32>
    %cst_8 = arith.constant dense<0.000000e+00> : vector<40x1280xf32>
    %8 = tpu.matmul %7, %1, %cst_8 {dimension_numbers = #tpu.dot_dimension_numbers<[1], [0], [0], [1], [0, 0, 1, 1], [], []>} : vector<40x81xf32>, vector<81x1280xf32>, vector<40x1280xf32> -> vector<40x1280xf32>
    %c0_9 = arith.constant 0 : index
    %c0_10 = arith.constant 0 : index
    %9 = vector.load %arg4[%c0_9, %c0_10] : memref<40x1xf32, #tpu.memory_space<vmem>>, vector<40x1xf32>
    %10 = vector.broadcast %9 : vector<40x1xf32> to vector<40x1280xf32>
    %11 = arith.addf %8, %10 : vector<40x1280xf32>
    %12 = arith.maximumf %6, %11 : vector<40x1280xf32>
    %c0_11 = arith.constant 0 : index
    %c0_12 = arith.constant 0 : index
    %c0_13 = arith.constant 0 : index
    %13 = vector.load %arg5[%c0_11, %c0_12, %c0_13] : memref<1x40x1280xf32, #tpu.memory_space<vmem>>, vector<1x40x1280xf32>
    %14 = vector.shape_cast %13 : vector<1x40x1280xf32> to vector<40x1280xf32>
    %15 = vector.shape_cast %12 : vector<40x1280xf32> to vector<1x40x1280xf32>
    tpu.vector_store %arg5[%c0_11, %c0_12, %c0_13], %15 {strides = array<i32>} : memref<1x40x1280xf32, #tpu.memory_space<vmem>>, vector<1x40x1280xf32>,
    return
  }
  func.func @transform_0(%arg0: i32) -> (i32, i32, i32) {
    %c0_i32 = arith.constant 0 : i32
    %c0_i32_0 = arith.constant 0 : i32
    %c0_i32_1 = arith.constant 0 : i32
    return %arg0, %c0_i32, %c0_i32_0 : i32, i32, i32
  }
  func.func @transform_1(%arg0: i32) -> (i32, i32) {
    %c0_i32 = arith.constant 0 : i32
    %c0_i32_0 = arith.constant 0 : i32
    %c0_i32_1 = arith.constant 0 : i32
    return %c0_i32, %c0_i32_0 : i32, i32
  }
  func.func @transform_2(%arg0: i32) -> (i32, i32) {
    %c0_i32 = arith.constant 0 : i32
    %c0_i32_0 = arith.constant 0 : i32
    %c0_i32_1 = arith.constant 0 : i32
    return %c0_i32, %c0_i32_0 : i32, i32
  }
  func.func @transform_3(%arg0: i32) -> (i32, i32) {
    %c0_i32 = arith.constant 0 : i32
    %c0_i32_0 = arith.constant 0 : i32
    %c0_i32_1 = arith.constant 0 : i32
    return %c0_i32, %c0_i32_0 : i32, i32
  }
  func.func @transform_4(%arg0: i32) -> (i32, i32, i32) {
    %c0_i32 = arith.constant 0 : i32
    %c0_i32_0 = arith.constant 0 : i32
    %c0_i32_1 = arith.constant 0 : i32
    return %arg0, %c0_i32, %c0_i32_0 : i32, i32, i32
  }
}

</mosaic_0001>

<llo_original>
// kernel: tpu_custom_call.1
$region0: #{tpu_custom_call.1}
  #allocation0 [shape = 'u32[]', space=smem, size = 0x4, offset = 0x4, fixed_abs, tag = 'smem constant byte address 0x4 - core index']
  #allocation1 [shape = 'u32[144,128]{1,0:T(1,128)}', space=vmem, size = 0x12000, scoped, tag = 'internal scratch']
  %s0 = inlined_call_operand.vmem [shape: f32[2,81,1280], index: 0, kind: input, shape index: {}]
  %s1 = inlined_call_operand.vmem [shape: f32[40,81], index: 1, kind: input, shape index: {}]
  %s2 = inlined_call_operand.vmem [shape: f32[40,81], index: 2, kind: input, shape index: {}]
  %s3 = inlined_call_operand.vmem [shape: f32[40,1], index: 3, kind: input, shape index: {}]
  %s4 = inlined_call_operand.hbm [shape: f32[2,40,1280], index: 4, kind: output, shape index: {}]
  %s5 = sld [smem:[#allocation0]]
  $region49: #{tpu_custom_call.1} parent=0
    _
  %s7 = ssub.s32 1, %s5
  %s8 = scalar_select 0, %s7, %s5
  $region1: #{tpu_custom_call.1} parent=0
    #allocation2 [shape = 'u8[409600]{0}', space=vmem, size = 0x64000, scoped, tag = 'output window, operand 0']
    #allocation3 [shape = 's32[2]{0}', space=sflag, size = 0x8, scoped, tag = 'scoped memory for tpu_custom_call.1']
    %9 = vsyncpa [#allocation3], 0
    %s10 = scalar_lea.sflag [#allocation3], 1
    %11 = vsyncpa %s10, 0
    loop: start=0, step=1, limit=4
    $region2: #{tpu_custom_call.1} parent=1 // loop_pre_header
      _
    $region3: #{tpu_custom_call.1} parent=1 // loop_header
      %s13 = sphi 0, %s17
      %p14 = scmp.ge.s32.totalorder %s13, 4
      %s23 = sphi 0, %s25
      %s26 = sphi 0, %s23
      %s27 = sphi 0, %s26
      %s43 = sphi 0, %s27
      %s47 = sphi 0, %s47
      %s49 = sphi 0, %s47
      %s50 = sphi 0, %s49
      %s64 = sphi 0, %s50
      %s68 = sphi 0, %s68
      %s70 = sphi 0, %s68
      %s71 = sphi 0, %s70
      %s85 = sphi 0, %s71
      %s89 = sphi 0, %s89
      %s91 = sphi 0, %s89
      %s92 = sphi 0, %s91
      %s106 = sphi 0, %s92
      %s112 = sphi 0, %s114
      %s115 = sphi 0, %s112
      %s116 = sphi 0, %s115
      %s132 = sphi 0, %s116
    $region4: #{tpu_custom_call.1} parent=1 // loop_header_branch
      %16 = sbr.rel (%p14) target = $region8
    $region5: #{tpu_custom_call.1} parent=1 // loop_body
      %s18 = ssub.s32 %s13, 1
      %s19 = ssub.s32 %s13, 2
      %s20 = sadd.s32 %s13, 1
      %s21 = ssub.s32 %s13, %s20
      %p22 = scmp.eq.s32.totalorder %s21, 0
      %s24 = sadd.s32 %s23, 1
      %s25 = scalar_select %p22, %s23, %s24
      %p28 = pneg %p22
      %p29 = scmp.eq.s32.totalorder %s13, 1
      %p30 = por %p28, %p29
      %p31 = scmp.ne.s32.totalorder %s23, %s26
      %p32 = scmp.eq.s32.totalorder %s13, 0
      %p33 = por %p31, %p32
      %p34 = scmp.ne.s32.totalorder %s23, %s26
      %p35 = scmp.eq.s32.totalorder %s18, 1
      %p36 = por %p34, %p35
      %p37 = scmp.ne.s32.totalorder %s26, %s27
      %p38 = scmp.eq.s32.totalorder %s18, 0
      %p39 = por %p37, %p38
      %p40 = scmp.ne.s32.totalorder %s26, %s27
      %p41 = scmp.eq.s32.totalorder %s19, 1
      %p42 = por %p40, %p41
      %p44 = scmp.ne.s32.totalorder %s27, %s43
      %p45 = scmp.eq.s32.totalorder %s19, 0
      %p46 = por %p44, %p45
      %s48 = sadd.s32 %s47, 1
      %p51 = scmp.eq.s32.totalorder %s13, 1
      %p52 = scmp.ne.s32.totalorder %s47, %s49
      %p53 = scmp.eq.s32.totalorder %s13, 0
      %p54 = por %p52, %p53
      %p55 = scmp.ne.s32.totalorder %s47, %s49
      %p56 = scmp.eq.s32.totalorder %s18, 1
      %p57 = por %p55, %p56
      %p58 = scmp.ne.s32.totalorder %s49, %s50
      %p59 = scmp.eq.s32.totalorder %s18, 0
      %p60 = por %p58, %p59
      %p61 = scmp.ne.s32.totalorder %s49, %s50
      %p62 = scmp.eq.s32.totalorder %s19, 1
      %p63 = por %p61, %p62
      %p65 = scmp.ne.s32.totalorder %s50, %s64
      %p66 = scmp.eq.s32.totalorder %s19, 0
      %p67 = por %p65, %p66
      %s69 = sadd.s32 %s68, 1
      %p72 = scmp.eq.s32.totalorder %s13, 1
      %p73 = scmp.ne.s32.totalorder %s68, %s70
      %p74 = scmp.eq.s32.totalorder %s13, 0
      %p75 = por %p73, %p74
      %p76 = scmp.ne.s32.totalorder %s68, %s70
      %p77 = scmp.eq.s32.totalorder %s18, 1
      %p78 = por %p76, %p77
      %p79 = scmp.ne.s32.totalorder %s70, %s71
      %p80 = scmp.eq.s32.totalorder %s18, 0
      %p81 = por %p79, %p80
      %p82 = scmp.ne.s32.totalorder %s70, %s71
      %p83 = scmp.eq.s32.totalorder %s19, 1
      %p84 = por %p82, %p83
      %p86 = scmp.ne.s32.totalorder %s71, %s85
      %p87 = scmp.eq.s32.totalorder %s19, 0
      %p88 = por %p86, %p87
      %s90 = sadd.s32 %s89, 1
      %p93 = scmp.eq.s32.totalorder %s13, 1
      %p94 = scmp.ne.s32.totalorder %s89, %s91
      %p95 = scmp.eq.s32.totalorder %s13, 0
      %p96 = por %p94, %p95
      %p97 = scmp.ne.s32.totalorder %s89, %s91
      %p98 = scmp.eq.s32.totalorder %s18, 1
      %p99 = por %p97, %p98
      %p100 = scmp.ne.s32.totalorder %s91, %s92
      %p101 = scmp.eq.s32.totalorder %s18, 0
      %p102 = por %p100, %p101
      %p103 = scmp.ne.s32.totalorder %s91, %s92
      %p104 = scmp.eq.s32.totalorder %s19, 1
      %p105 = por %p103, %p104
      %p107 = scmp.ne.s32.totalorder %s92, %s106
      %p108 = scmp.eq.s32.totalorder %s19, 0
      %p109 = por %p107, %p108
      %s110 = ssub.s32 %s13, %s20
      %p111 = scmp.eq.s32.totalorder %s110, 0
      %s113 = sadd.s32 %s112, 1
      %s114 = scalar_select %p111, %s112, %s113
      %p117 = pneg %p111
      %p118 = scmp.eq.s32.totalorder %s13, 1
      %p119 = por %p117, %p118
      %p120 = scmp.ne.s32.totalorder %s112, %s115
      %p121 = scmp.eq.s32.totalorder %s13, 0
      %p122 = por %p120, %p121
      %p123 = scmp.ne.s32.totalorder %s112, %s115
      %p124 = scmp.eq.s32.totalorder %s18, 1
      %p125 = por %p123, %p124
      %p126 = scmp.ne.s32.totalorder %s115, %s116
      %p127 = scmp.eq.s32.totalorder %s18, 0
      %p128 = por %p126, %p127
      %p129 = scmp.ne.s32.totalorder %s115, %s116
      %p130 = scmp.eq.s32.totalorder %s19, 1
      %p131 = por %p129, %p130
      %p133 = scmp.ne.s32.totalorder %s116, %s132
      %p134 = scmp.eq.s32.totalorder %s19, 0
      %p135 = por %p133, %p134
      %p136 = scmp.le.s32.totalorder 1, %s13
      %p137 = scmp.lt.s32.totalorder %s13, 3
      %p138 = pnand %p136, %p137
      %p139 = pneg %p138
      // Predicated region
      $region9: #{tpu_custom_call.1} parent=5 // pred_check
        _
      $region10: #{tpu_custom_call.1} parent=5 // pred_check_branch
        %141 = sbr.rel (%p138) target = $region12
      $region11: #{tpu_custom_call.1} parent=5 // pred_region
        %s142 = ssub.s32 %s13, 1
        // Predicated region
        $region13: #{tpu_custom_call.1} parent=11 // pred_check
          %p143 = pneg %p60
        $region14: #{tpu_custom_call.1} parent=11 // pred_check_branch
          %145 = sbr.rel (%p143) target = $region16
        $region15: #{tpu_custom_call.1} parent=11 // pred_region
          _
        $region16: #{tpu_custom_call.1} parent=11 // pred_fallthru
          _
        // Predicated region
        $region17: #{tpu_custom_call.1} parent=11 // pred_check
          %p146 = pneg %p81
        $region18: #{tpu_custom_call.1} parent=11 // pred_check_branch
          %148 = sbr.rel (%p146) target = $region20
        $region19: #{tpu_custom_call.1} parent=11 // pred_region
          _
        $region20: #{tpu_custom_call.1} parent=11 // pred_fallthru
          _
        // Predicated region
        $region21: #{tpu_custom_call.1} parent=11 // pred_check
          %p149 = pneg %p102
        $region22: #{tpu_custom_call.1} parent=11 // pred_check_branch
          %151 = sbr.rel (%p149) target = $region24
        $region23: #{tpu_custom_call.1} parent=11 // pred_region
          _
        $region24: #{tpu_custom_call.1} parent=11 // pred_fallthru
          _
      $region12: #{tpu_custom_call.1} parent=5 // pred_fallthru
        _
      %p152 = scmp.lt.s32.totalorder %s13, 2
      // Predicated region
      $region25: #{tpu_custom_call.1} parent=5 // pred_check
        %p153 = pneg %p152
      $region26: #{tpu_custom_call.1} parent=5 // pred_check_branch
        %155 = sbr.rel (%p153) target = $region28
      $region27: #{tpu_custom_call.1} parent=5 // pred_region
        // Predicated region
        $region29: #{tpu_custom_call.1} parent=27 // pred_check
          %p156 = pneg %p33
        $region30: #{tpu_custom_call.1} parent=27 // pred_check_branch
          %158 = sbr.rel (%p156) target = $region32
        $region31: #{tpu_custom_call.1} parent=27 // pred_region
          %p159 = scmp.lt.s32.totalorder %s13, 1
          %s160 = scalar_select %p159, %s13, 1
          %s161 = smul.addr %s160, 110
          %s162 = smul.addr %s161, 8
          %s163 = scalar_lea.vmem %s0, %s162
        $region32: #{tpu_custom_call.1} parent=27 // pred_fallthru
          _
      $region28: #{tpu_custom_call.1} parent=5 // pred_fallthru
        _
      %p164 = scmp.le.s32.totalorder 1, %s13
      %p165 = scmp.lt.s32.totalorder %s13, 3
      %p166 = pnand %p164, %p165
      %p167 = pneg %p166
      // Predicated region
      $region33: #{tpu_custom_call.1} parent=5 // pred_check
        _
      $region34: #{tpu_custom_call.1} parent=5 // pred_check_branch
        %169 = sbr.rel (%p166) target = $region36
      $region35: #{tpu_custom_call.1} parent=5 // pred_region
        %s170 = ssub.s32 %s13, 1
        %p171 = scmp.lt.s32.totalorder %s18, 1
        %s172 = scalar_select %p171, %s18, 1
        %s173 = smul.addr %s172, 110
        %s174 = smul.addr %s173, 8
        %s175 = scalar_lea.vmem %s0, %s174
        %p176 = pneg %p39
        %p177 = pneg %p36
        %p178 = pneg %p60
        %p179 = pneg %p57
        %p180 = pneg %p81
        %p181 = pneg %p78
        %p182 = pneg %p102
        %p183 = pneg %p99
        %p184 = pneg %p128
        %p185 = pneg %p125
        %s186 = sand.u32 %s115, 1
        %s187 = scalar_lea.sflag [#allocation3], %s186
        %s188 = sand.u32 %s115, 1
        %s189 = smul.addr %s188, 400
        %s190 = scalar_lea.vmem [#allocation2], %s189
        %p191 = scmp.lt.s32.totalorder %s18, 1
        %s192 = scalar_select %p191, %s18, 1
        %s193 = smul.addr %s192, 110
        %s194 = smul.addr %s193, 8
        %s195 = scalar_lea.vmem %s0, %s194
        %v196 = vld [vmem:[%s195] sm:$0xff]
        %v197 = vld [vmem:[%s195 + $0x8] sm:$0xff]
        %v198 = vld [vmem:[%s195 + $0x10] sm:$0xff]
        %v199 = vld [vmem:[%s195 + $0x18] sm:$0xff]
        %v200 = vld [vmem:[%s195 + $0x20] sm:$0xff]
        %v201 = vld [vmem:[%s195 + $0x28] sm:$0xff]
        %v202 = vld [vmem:[%s195 + $0x30] sm:$0xff]
        %v203 = vld [vmem:[%s195 + $0x38] sm:$0xff]
        %v204 = vld [vmem:[%s195 + $0x40] sm:$0xff]
        %v205 = vld [vmem:[%s195 + $0x48] sm:$0xff]
        %v206 = vld [vmem:[%s195 + $0x50] sm:$0xff]
        %v207 = vld [vmem:[%s195 + $0x58] sm:$0xff]
        %v208 = vld [vmem:[%s195 + $0x60] sm:$0xff]
        %v209 = vld [vmem:[%s195 + $0x68] sm:$0xff]
        %v210 = vld [vmem:[%s195 + $0x70] sm:$0xff]
        %v211 = vld [vmem:[%s195 + $0x78] sm:$0xff]
        %v212 = vld [vmem:[%s195 + $0x80] sm:$0xff]
        %v213 = vld [vmem:[%s195 + $0x88] sm:$0xff]
        %v214 = vld [vmem:[%s195 + $0x90] sm:$0xff]
        %v215 = vld [vmem:[%s195 + $0x98] sm:$0xff]
        %v216 = vld [vmem:[%s195 + $0xa0] sm:$0xff]
        %v217 = vld [vmem:[%s195 + $0xa8] sm:$0xff]
        %v218 = vld [vmem:[%s195 + $0xb0] sm:$0xff]
        %v219 = vld [vmem:[%s195 + $0xb8] sm:$0xff]
        %v220 = vld [vmem:[%s195 + $0xc0] sm:$0xff]
        %v221 = vld [vmem:[%s195 + $0xc8] sm:$0xff]
        %v222 = vld [vmem:[%s195 + $0xd0] sm:$0xff]
        %v223 = vld [vmem:[%s195 + $0xd8] sm:$0xff]
        %v224 = vld [vmem:[%s195 + $0xe0] sm:$0xff]
        %v225 = vld [vmem:[%s195 + $0xe8] sm:$0xff]
        %v226 = vld [vmem:[%s195 + $0xf0] sm:$0xff]
        %v227 = vld [vmem:[%s195 + $0xf8] sm:$0xff]
        %v228 = vld [vmem:[%s195 + $0x100] sm:$0xff]
        %v229 = vld [vmem:[%s195 + $0x108] sm:$0xff]
        %v230 = vld [vmem:[%s195 + $0x110] sm:$0xff]
        %v231 = vld [vmem:[%s195 + $0x118] sm:$0xff]
        %v232 = vld [vmem:[%s195 + $0x120] sm:$0xff]
        %v233 = vld [vmem:[%s195 + $0x128] sm:$0xff]
        %v234 = vld [vmem:[%s195 + $0x130] sm:$0xff]
        %v235 = vld [vmem:[%s195 + $0x138] sm:$0xff]
        %v236 = vld [vmem:[%s195 + $0x140] sm:$0xff]
        %v237 = vld [vmem:[%s195 + $0x148] sm:$0xff]
        %v238 = vld [vmem:[%s195 + $0x150] sm:$0xff]
        %v239 = vld [vmem:[%s195 + $0x158] sm:$0xff]
        %v240 = vld [vmem:[%s195 + $0x160] sm:$0xff]
        %v241 = vld [vmem:[%s195 + $0x168] sm:$0xff]
        %v242 = vld [vmem:[%s195 + $0x170] sm:$0xff]
        %v243 = vld [vmem:[%s195 + $0x178] sm:$0xff]
        %v244 = vld [vmem:[%s195 + $0x180] sm:$0xff]
        %v245 = vld [vmem:[%s195 + $0x188] sm:$0xff]
        %v246 = vld [vmem:[%s195 + $0x190] sm:$0xff]
        %v247 = vld [vmem:[%s195 + $0x198] sm:$0xff]
        %v248 = vld [vmem:[%s195 + $0x1a0] sm:$0xff]
        %v249 = vld [vmem:[%s195 + $0x1a8] sm:$0xff]
        %v250 = vld [vmem:[%s195 + $0x1b0] sm:$0xff]
        %v251 = vld [vmem:[%s195 + $0x1b8] sm:$0xff]
        %v252 = vld [vmem:[%s195 + $0x1c0] sm:$0xff]
        %v253 = vld [vmem:[%s195 + $0x1c8] sm:$0xff]
        %v254 = vld [vmem:[%s195 + $0x1d0] sm:$0xff]
        %v255 = vld [vmem:[%s195 + $0x1d8] sm:$0xff]
        %v256 = vld [vmem:[%s195 + $0x1e0] sm:$0xff]
        %v257 = vld [vmem:[%s195 + $0x1e8] sm:$0xff]
        %v258 = vld [vmem:[%s195 + $0x1f0] sm:$0xff]
        %v259 = vld [vmem:[%s195 + $0x1f8] sm:$0xff]
        %v260 = vld [vmem:[%s195 + $0x200] sm:$0xff]
        %v261 = vld [vmem:[%s195 + $0x208] sm:$0xff]
        %v262 = vld [vmem:[%s195 + $0x210] sm:$0xff]
        %v263 = vld [vmem:[%s195 + $0x218] sm:$0xff]
        %v264 = vld [vmem:[%s195 + $0x220] sm:$0xff]
        %v265 = vld [vmem:[%s195 + $0x228] sm:$0xff]
        %v266 = vld [vmem:[%s195 + $0x230] sm:$0xff]
        %v267 = vld [vmem:[%s195 + $0x238] sm:$0xff]
        %v268 = vld [vmem:[%s195 + $0x240] sm:$0xff]
        %v269 = vld [vmem:[%s195 + $0x248] sm:$0xff]
        %v270 = vld [vmem:[%s195 + $0x250] sm:$0xff]
        %v271 = vld [vmem:[%s195 + $0x258] sm:$0xff]
        %v272 = vld [vmem:[%s195 + $0x260] sm:$0xff]
        %v273 = vld [vmem:[%s195 + $0x268] sm:$0xff]
        %v274 = vld [vmem:[%s195 + $0x270] sm:$0xff]
        %v275 = vld [vmem:[%s195 + $0x278] sm:$0xff]
        %v276 = vld [vmem:[%s195 + $0x280] sm:$0xff]
        %v277 = vld [vmem:[%s195 + $0x288] sm:$0xff]
        %v278 = vld [vmem:[%s195 + $0x290] sm:$0xff]
        %v279 = vld [vmem:[%s195 + $0x298] sm:$0xff]
        %v280 = vld [vmem:[%s195 + $0x2a0] sm:$0xff]
        %v281 = vld [vmem:[%s195 + $0x2a8] sm:$0xff]
        %v282 = vld [vmem:[%s195 + $0x2b0] sm:$0xff]
        %v283 = vld [vmem:[%s195 + $0x2b8] sm:$0xff]
        %v284 = vld [vmem:[%s195 + $0x2c0] sm:$0xff]
        %v285 = vld [vmem:[%s195 + $0x2c8] sm:$0xff]
        %v286 = vld [vmem:[%s195 + $0x2d0] sm:$0xff]
        %v287 = vld [vmem:[%s195 + $0x2d8] sm:$0xff]
        %v288 = vld [vmem:[%s195 + $0x2e0] sm:$0xff]
        %v289 = vld [vmem:[%s195 + $0x2e8] sm:$0xff]
        %v290 = vld [vmem:[%s195 + $0x2f0] sm:$0xff]
        %v291 = vld [vmem:[%s195 + $0x2f8] sm:$0xff]
        %v292 = vld [vmem:[%s195 + $0x300] sm:$0xff]
        %v293 = vld [vmem:[%s195 + $0x308] sm:$0xff]
        %v294 = vld [vmem:[%s195 + $0x310] sm:$0xff]
        %v295 = vld [vmem:[%s195 + $0x318] sm:$0xff]
        %v296 = vld [vmem:[%s195 + $0x320] sm:$0x1]
        %v297 = vld [vmem:[%s195 + $0x328] sm:$0x1]
        %v298 = vld [vmem:[%s195 + $0x330] sm:$0x1]
        %v299 = vld [vmem:[%s195 + $0x338] sm:$0x1]
        %v300 = vld [vmem:[%s195 + $0x340] sm:$0x1]
        %v301 = vld [vmem:[%s195 + $0x348] sm:$0x1]
        %v302 = vld [vmem:[%s195 + $0x350] sm:$0x1]
        %v303 = vld [vmem:[%s195 + $0x358] sm:$0x1]
        %v304 = vld [vmem:[%s195 + $0x360] sm:$0x1]
        %v305 = vld [vmem:[%s195 + $0x368] sm:$0x1]
        %v306 = vld [vmem:[%s1] sm:$0xff]
        %v307 = vld [vmem:[%s1 + $0x8] sm:$0xff]
        %v308 = vld [vmem:[%s1 + $0x10] sm:$0xff]
        %v309 = vld [vmem:[%s1 + $0x18] sm:$0xff]
        %v310 = vld [vmem:[%s1 + $0x20] sm:$0xff]
        %v311 = vld [vmem:[%s3] sm:$0xff]
        %v312 = vld [vmem:[%s3 + $0x8] sm:$0xff]
        %v313 = vld [vmem:[%s3 + $0x10] sm:$0xff]
        %v314 = vld [vmem:[%s3 + $0x18] sm:$0xff]
        %v315 = vld [vmem:[%s3 + $0x20] sm:$0xff]
        %317 = vset.pattern.permute.xlu0 0
        %318 = vperm.xlu0 %317, %v311
        %v319 = vpop.permute.xlu0 %318
        %322 = vset.pattern.permute.xlu0 0
        %323 = vperm.xlu0 %322, %v312
        %v324 = vpop.permute.xlu0 %323
        %327 = vset.pattern.permute.xlu0 0
        %328 = vperm.xlu0 %327, %v313
        %v329 = vpop.permute.xlu0 %328
        %332 = vset.pattern.permute.xlu0 0
        %333 = vperm.xlu0 %332, %v314
        %v334 = vpop.permute.xlu0 %333
        %337 = vset.pattern.permute.xlu0 0
        %338 = vperm.xlu0 %337, %v315
        %v339 = vpop.permute.xlu0 %338
        %vm341 = vcmask 662528
        %v343 = vsel %vm341, %v306, 0
        %v346 = vsel %vm341, %v307, 0
        %v349 = vsel %vm341, %v308, 0
        %v352 = vsel %vm341, %v309, 0
        %v355 = vsel %vm341, %v310, 0
        %vm357 = vcmask 1040384
        %v359 = vsel %vm357, %v296, 0
        %v362 = vsel %vm357, %v297, 0
        %v365 = vsel %vm357, %v298, 0
        %v368 = vsel %vm357, %v299, 0
        %v371 = vsel %vm357, %v300, 0
        %v374 = vsel %vm357, %v301, 0
        %v377 = vsel %vm357, %v302, 0
        %v380 = vsel %vm357, %v303, 0
        %v383 = vsel %vm357, %v304, 0
        %v386 = vsel %vm357, %v305, 0
        %388 = vmatprep.subr.mxu0 0.0
        %389 = vmatpush1.msra.mxu0 0.0
        %390 = vmatprep.subr.mxu0 0.0
        %391 = vmatpush1.msra.mxu0 0.0
        %392 = vmatprep.subr.mxu0 0.0
        %393 = vmatpush1.msra.mxu0 0.0
        %394 = vmatprep.subr.mxu0 0.0
        %395 = vmatpush1.msra.mxu0 0.0
        %396 = vmatprep.subr.mxu0 0.0
        %397 = vmatpush1.msra.mxu0 0.0
        %398 = vmatprep.subr.mxu0 %v362
        %399 = vmatpush1.msra.mxu0 %v359
        %400 = vmatprep.subr.mxu0 %v287
        %401 = vmatpush1.msra.mxu0 %v286
        %402 = vmatprep.subr.mxu0 %v277
        %403 = vmatpush1.msra.mxu0 %v276
        %404 = vmatprep.subr.mxu0 %v267
        %405 = vmatpush1.msra.mxu0 %v266
        %406 = vmatprep.subr.mxu0 %v257
        %407 = vmatpush1.msra.mxu0 %v256
        %408 = vmatprep.subr.mxu0 %v247
        %409 = vmatpush1.msra.mxu0 %v246
        %410 = vmatprep.subr.mxu0 %v237
        %411 = vmatpush1.msra.mxu0 %v236
        %412 = vmatprep.subr.mxu0 %v227
        %413 = vmatpush1.msra.mxu0 %v226
        %414 = vmatprep.subr.mxu0 %v217
        %415 = vmatpush1.msra.mxu0 %v216
        %416 = vmatprep.subr.mxu0 %v207
        %417 = vmatpush1.msra.mxu0 %v206
        %418 = vmatprep.subr.mxu0 %v197
        %419 = vmatpush1.msra.mxu0 %v196
        %420 = vmatprep.subr.mxu0 0.0
        %421 = vmatpush2.msra.mxu0 0.0
        %422 = vmatprep.subr.mxu0 0.0
        %423 = vmatpush2.msra.mxu0 0.0
        %424 = vmatprep.subr.mxu0 0.0
        %425 = vmatpush2.msra.mxu0 0.0
        %426 = vmatprep.subr.mxu0 0.0
        %427 = vmatpush2.msra.mxu0 0.0
        %428 = vmatprep.subr.mxu0 0.0
        %429 = vmatpush2.msra.mxu0 0.0
        %430 = vmatprep.subr.mxu0 0.0
        %431 = vmatpush2.msra.mxu0 0.0
        %432 = vmatprep.subr.mxu0 0.0
        %433 = vmatpush2.msra.mxu0 0.0
        %434 = vmatprep.subr.mxu0 0.0
        %435 = vmatpush2.msra.mxu0 0.0
        %436 = vmatprep.subr.mxu0 0.0
        %437 = vmatpush2.msra.mxu0 0.0
        %438 = vmatprep.subr.mxu0 0.0
        %439 = vmatpush2.msra.mxu0 0.0
        %440 = vmatprep.subr.mxu0 0.0
        %441 = vmatpush2.msra.mxu0 0.0
        %442 = vmatprep.subr.mxu0 0.0
        %443 = vmatpush2.msra.mxu0 0.0
        %444 = vmatprep.subr.mxu0 0.0
        %445 = vmatpush2.msra.mxu0 0.0
        %446 = vmatprep.subr.mxu0 0.0
        %447 = vmatpush2.msra.mxu0 0.0
        %448 = vmatprep.subr.mxu0 0.0
        %449 = vmatpush2.msra.mxu0 0.0
        %450 = vmatprep.subr.mxu0 0.0
        %451 = vmatpush2.msra.mxu0 0.0
        %452 = vmatprep.mubr.f32.mxu0 0.0
        %453 = vmatmul.mubr.f32.gmra.mxu0 %v343
        %v454 = vpop.f32.mrf.mxu0
        %v455 = vadd.f32 %v319, %v454
        %v456 = vpop.f32.mrf.mxu0
        %v457 = vadd.f32 %v319, %v456
        %458 = vmatprep.mubr.f32.mxu0 0.0
        %459 = vmatmul.mubr.f32.gmra.mxu0 %v346
        %v460 = vpop.f32.mrf.mxu0
        %v461 = vadd.f32 %v324, %v460
        %v462 = vpop.f32.mrf.mxu0
        %v463 = vadd.f32 %v324, %v462
        %464 = vmatprep.mubr.f32.mxu0 0.0
        %465 = vmatmul.mubr.f32.gmra.mxu0 %v349
        %v466 = vpop.f32.mrf.mxu0
        %v467 = vadd.f32 %v329, %v466
        %v468 = vpop.f32.mrf.mxu0
        %v469 = vadd.f32 %v329, %v468
        %470 = vmatprep.mubr.f32.mxu0 0.0
        %471 = vmatmul.mubr.f32.gmra.mxu0 %v352
        %v472 = vpop.f32.mrf.mxu0
        %v473 = vadd.f32 %v334, %v472
        %v474 = vpop.f32.mrf.mxu0
        %v475 = vadd.f32 %v334, %v474
        %476 = vmatprep.mubr.f32.mxu0 0.0
        %477 = vmatmul.mubr.f32.gmra.mxu0 %v355
        %v478 = vpop.f32.mrf.mxu0
        %v479 = vadd.f32 %v339, %v478
        %v480 = vpop.f32.mrf.mxu0
        %v481 = vadd.f32 %v339, %v480
        %482 = vdwg.mxu0
        %483 = vmatprep.subr.mxu0 0.0
        %484 = vmatpush1.msra.mxu0 0.0
        %485 = vmatprep.subr.mxu0 0.0
        %486 = vmatpush1.msra.mxu0 0.0
        %487 = vmatprep.subr.mxu0 0.0
        %488 = vmatpush1.msra.mxu0 0.0
        %489 = vmatprep.subr.mxu0 0.0
        %490 = vmatpush1.msra.mxu0 0.0
        %491 = vmatprep.subr.mxu0 0.0
        %492 = vmatpush1.msra.mxu0 0.0
        %493 = vmatprep.subr.mxu0 %v368
        %494 = vmatpush1.msra.mxu0 %v365
        %495 = vmatprep.subr.mxu0 %v289
        %496 = vmatpush1.msra.mxu0 %v288
        %497 = vmatprep.subr.mxu0 %v279
        %498 = vmatpush1.msra.mxu0 %v278
        %499 = vmatprep.subr.mxu0 %v269
        %500 = vmatpush1.msra.mxu0 %v268
        %501 = vmatprep.subr.mxu0 %v259
        %502 = vmatpush1.msra.mxu0 %v258
        %503 = vmatprep.subr.mxu0 %v249
        %504 = vmatpush1.msra.mxu0 %v248
        %505 = vmatprep.subr.mxu0 %v239
        %506 = vmatpush1.msra.mxu0 %v238
        %507 = vmatprep.subr.mxu0 %v229
        %508 = vmatpush1.msra.mxu0 %v228
        %509 = vmatprep.subr.mxu0 %v219
        %510 = vmatpush1.msra.mxu0 %v218
        %511 = vmatprep.subr.mxu0 %v209
        %512 = vmatpush1.msra.mxu0 %v208
        %513 = vmatprep.subr.mxu0 %v199
        %514 = vmatpush1.msra.mxu0 %v198
        %515 = vmatprep.subr.mxu0 0.0
        %516 = vmatpush2.msra.mxu0 0.0
        %517 = vmatprep.subr.mxu0 0.0
        %518 = vmatpush2.msra.mxu0 0.0
        %519 = vmatprep.subr.mxu0 0.0
        %520 = vmatpush2.msra.mxu0 0.0
        %521 = vmatprep.subr.mxu0 0.0
        %522 = vmatpush2.msra.mxu0 0.0
        %523 = vmatprep.subr.mxu0 0.0
        %524 = vmatpush2.msra.mxu0 0.0
        %525 = vmatprep.subr.mxu0 0.0
        %526 = vmatpush2.msra.mxu0 0.0
        %527 = vmatprep.subr.mxu0 0.0
        %528 = vmatpush2.msra.mxu0 0.0
        %529 = vmatprep.subr.mxu0 0.0
        %530 = vmatpush2.msra.mxu0 0.0
        %531 = vmatprep.subr.mxu0 0.0
        %532 = vmatpush2.msra.mxu0 0.0
        %533 = vmatprep.subr.mxu0 0.0
        %534 = vmatpush2.msra.mxu0 0.0
        %535 = vmatprep.subr.mxu0 0.0
        %536 = vmatpush2.msra.mxu0 0.0
        %537 = vmatprep.subr.mxu0 0.0
        %538 = vmatpush2.msra.mxu0 0.0
        %539 = vmatprep.subr.mxu0 0.0
        %540 = vmatpush2.msra.mxu0 0.0
        %541 = vmatprep.subr.mxu0 0.0
        %542 = vmatpush2.msra.mxu0 0.0
        %543 = vmatprep.subr.mxu0 0.0
        %544 = vmatpush2.msra.mxu0 0.0
        %545 = vmatprep.subr.mxu0 0.0
        %546 = vmatpush2.msra.mxu0 0.0
        %547 = vmatprep.mubr.f32.mxu0 0.0
        %548 = vmatmul.mubr.f32.gmra.mxu0 %v343
        %v549 = vpop.f32.mrf.mxu0
        %v550 = vadd.f32 %v319, %v549
        %v551 = vpop.f32.mrf.mxu0
        %v552 = vadd.f32 %v319, %v551
        %553 = vmatprep.mubr.f32.mxu0 0.0
        %554 = vmatmul.mubr.f32.gmra.mxu0 %v346
        %v555 = vpop.f32.mrf.mxu0
        %v556 = vadd.f32 %v324, %v555
        %v557 = vpop.f32.mrf.mxu0
        %v558 = vadd.f32 %v324, %v557
        %559 = vmatprep.mubr.f32.mxu0 0.0
        %560 = vmatmul.mubr.f32.gmra.mxu0 %v349
        %v561 = vpop.f32.mrf.mxu0
        %v562 = vadd.f32 %v329, %v561
        %v563 = vpop.f32.mrf.mxu0
        %v564 = vadd.f32 %v329, %v563
        %565 = vmatprep.mubr.f32.mxu0 0.0
        %566 = vmatmul.mubr.f32.gmra.mxu0 %v352
        %v567 = vpop.f32.mrf.mxu0
        %v568 = vadd.f32 %v334, %v567
        %v569 = vpop.f32.mrf.mxu0
        %v570 = vadd.f32 %v334, %v569
        %571 = vmatprep.mubr.f32.mxu0 0.0
        %572 = vmatmul.mubr.f32.gmra.mxu0 %v355
        %v573 = vpop.f32.mrf.mxu0
        %v574 = vadd.f32 %v339, %v573
        %v575 = vpop.f32.mrf.mxu0
        %v576 = vadd.f32 %v339, %v575
        %577 = vdwg.mxu0
        %578 = vmatprep.subr.mxu0 0.0
        %579 = vmatpush1.msra.mxu0 0.0
        %580 = vmatprep.subr.mxu0 0.0
        %581 = vmatpush1.msra.mxu0 0.0
        %582 = vmatprep.subr.mxu0 0.0
        %583 = vmatpush1.msra.mxu0 0.0
        %584 = vmatprep.subr.mxu0 0.0
        %585 = vmatpush1.msra.mxu0 0.0
        %586 = vmatprep.subr.mxu0 0.0
        %587 = vmatpush1.msra.mxu0 0.0
        %588 = vmatprep.subr.mxu0 %v374
        %589 = vmatpush1.msra.mxu0 %v371
        %590 = vmatprep.subr.mxu0 %v291
        %591 = vmatpush1.msra.mxu0 %v290
        %592 = vmatprep.subr.mxu0 %v281
        %593 = vmatpush1.msra.mxu0 %v280
        %594 = vmatprep.subr.mxu0 %v271
        %595 = vmatpush1.msra.mxu0 %v270
        %596 = vmatprep.subr.mxu0 %v261
        %597 = vmatpush1.msra.mxu0 %v260
        %598 = vmatprep.subr.mxu0 %v251
        %599 = vmatpush1.msra.mxu0 %v250
        %600 = vmatprep.subr.mxu0 %v241
        %601 = vmatpush1.msra.mxu0 %v240
        %602 = vmatprep.subr.mxu0 %v231
        %603 = vmatpush1.msra.mxu0 %v230
        %604 = vmatprep.subr.mxu0 %v221
        %605 = vmatpush1.msra.mxu0 %v220
        %606 = vmatprep.subr.mxu0 %v211
        %607 = vmatpush1.msra.mxu0 %v210
        %608 = vmatprep.subr.mxu0 %v201
        %609 = vmatpush1.msra.mxu0 %v200
        %610 = vmatprep.subr.mxu0 0.0
        %611 = vmatpush2.msra.mxu0 0.0
        %612 = vmatprep.subr.mxu0 0.0
        %613 = vmatpush2.msra.mxu0 0.0
        %614 = vmatprep.subr.mxu0 0.0
        %615 = vmatpush2.msra.mxu0 0.0
        %616 = vmatprep.subr.mxu0 0.0
        %617 = vmatpush2.msra.mxu0 0.0
        %618 = vmatprep.subr.mxu0 0.0
        %619 = vmatpush2.msra.mxu0 0.0
        %620 = vmatprep.subr.mxu0 0.0
        %621 = vmatpush2.msra.mxu0 0.0
        %622 = vmatprep.subr.mxu0 0.0
        %623 = vmatpush2.msra.mxu0 0.0
        %624 = vmatprep.subr.mxu0 0.0
        %625 = vmatpush2.msra.mxu0 0.0
        %626 = vmatprep.subr.mxu0 0.0
        %627 = vmatpush2.msra.mxu0 0.0
        %628 = vmatprep.subr.mxu0 0.0
        %629 = vmatpush2.msra.mxu0 0.0
        %630 = vmatprep.subr.mxu0 0.0
        %631 = vmatpush2.msra.mxu0 0.0
        %632 = vmatprep.subr.mxu0 0.0
        %633 = vmatpush2.msra.mxu0 0.0
        %634 = vmatprep.subr.mxu0 0.0
        %635 = vmatpush2.msra.mxu0 0.0
        %636 = vmatprep.subr.mxu0 0.0
        %637 = vmatpush2.msra.mxu0 0.0
        %638 = vmatprep.subr.mxu0 0.0
        %639 = vmatpush2.msra.mxu0 0.0
        %640 = vmatprep.subr.mxu0 0.0
        %641 = vmatpush2.msra.mxu0 0.0
        %642 = vmatprep.mubr.f32.mxu0 0.0
        %643 = vmatmul.mubr.f32.gmra.mxu0 %v343
        %v644 = vpop.f32.mrf.mxu0
        %v645 = vadd.f32 %v319, %v644
        %v646 = vpop.f32.mrf.mxu0
        %v647 = vadd.f32 %v319, %v646
        %648 = vmatprep.mubr.f32.mxu0 0.0
        %649 = vmatmul.mubr.f32.gmra.mxu0 %v346
        %v650 = vpop.f32.mrf.mxu0
        %v651 = vadd.f32 %v324, %v650
        %v652 = vpop.f32.mrf.mxu0
        %v653 = vadd.f32 %v324, %v652
        %654 = vmatprep.mubr.f32.mxu0 0.0
        %655 = vmatmul.mubr.f32.gmra.mxu0 %v349
        %v656 = vpop.f32.mrf.mxu0
        %v657 = vadd.f32 %v329, %v656
        %v658 = vpop.f32.mrf.mxu0
        %v659 = vadd.f32 %v329, %v658
        %660 = vmatprep.mubr.f32.mxu0 0.0
        %661 = vmatmul.mubr.f32.gmra.mxu0 %v352
        %v662 = vpop.f32.mrf.mxu0
        %v663 = vadd.f32 %v334, %v662
        %v664 = vpop.f32.mrf.mxu0
        %v665 = vadd.f32 %v334, %v664
        %666 = vmatprep.mubr.f32.mxu0 0.0
        %667 = vmatmul.mubr.f32.gmra.mxu0 %v355
        %v668 = vpop.f32.mrf.mxu0
        %v669 = vadd.f32 %v339, %v668
        %v670 = vpop.f32.mrf.mxu0
        %v671 = vadd.f32 %v339, %v670
        %672 = vdwg.mxu0
        %673 = vmatprep.subr.mxu0 0.0
        %674 = vmatpush1.msra.mxu0 0.0
        %675 = vmatprep.subr.mxu0 0.0
        %676 = vmatpush1.msra.mxu0 0.0
        %677 = vmatprep.subr.mxu0 0.0
        %678 = vmatpush1.msra.mxu0 0.0
        %679 = vmatprep.subr.mxu0 0.0
        %680 = vmatpush1.msra.mxu0 0.0
        %681 = vmatprep.subr.mxu0 0.0
        %682 = vmatpush1.msra.mxu0 0.0
        %683 = vmatprep.subr.mxu0 %v380
        %684 = vmatpush1.msra.mxu0 %v377
        %685 = vmatprep.subr.mxu0 %v293
        %686 = vmatpush1.msra.mxu0 %v292
        %687 = vmatprep.subr.mxu0 %v283
        %688 = vmatpush1.msra.mxu0 %v282
        %689 = vmatprep.subr.mxu0 %v273
        %690 = vmatpush1.msra.mxu0 %v272
        %691 = vmatprep.subr.mxu0 %v263
        %692 = vmatpush1.msra.mxu0 %v262
        %693 = vmatprep.subr.mxu0 %v253
        %694 = vmatpush1.msra.mxu0 %v252
        %695 = vmatprep.subr.mxu0 %v243
        %696 = vmatpush1.msra.mxu0 %v242
        %697 = vmatprep.subr.mxu0 %v233
        %698 = vmatpush1.msra.mxu0 %v232
        %699 = vmatprep.subr.mxu0 %v223
        %700 = vmatpush1.msra.mxu0 %v222
        %701 = vmatprep.subr.mxu0 %v213
        %702 = vmatpush1.msra.mxu0 %v212
        %703 = vmatprep.subr.mxu0 %v203
        %704 = vmatpush1.msra.mxu0 %v202
        %705 = vmatprep.subr.mxu0 0.0
        %706 = vmatpush2.msra.mxu0 0.0
        %707 = vmatprep.subr.mxu0 0.0
        %708 = vmatpush2.msra.mxu0 0.0
        %709 = vmatprep.subr.mxu0 0.0
        %710 = vmatpush2.msra.mxu0 0.0
        %711 = vmatprep.subr.mxu0 0.0
        %712 = vmatpush2.msra.mxu0 0.0
        %713 = vmatprep.subr.mxu0 0.0
        %714 = vmatpush2.msra.mxu0 0.0
        %715 = vmatprep.subr.mxu0 0.0
        %716 = vmatpush2.msra.mxu0 0.0
        %717 = vmatprep.subr.mxu0 0.0
        %718 = vmatpush2.msra.mxu0 0.0
        %719 = vmatprep.subr.mxu0 0.0
        %720 = vmatpush2.msra.mxu0 0.0
        %721 = vmatprep.subr.mxu0 0.0
        %722 = vmatpush2.msra.mxu0 0.0
        %723 = vmatprep.subr.mxu0 0.0
        %724 = vmatpush2.msra.mxu0 0.0
        %725 = vmatprep.subr.mxu0 0.0
        %726 = vmatpush2.msra.mxu0 0.0
        %727 = vmatprep.subr.mxu0 0.0
        %728 = vmatpush2.msra.mxu0 0.0
        %729 = vmatprep.subr.mxu0 0.0
        %730 = vmatpush2.msra.mxu0 0.0
        %731 = vmatprep.subr.mxu0 0.0
        %732 = vmatpush2.msra.mxu0 0.0
        %733 = vmatprep.subr.mxu0 0.0
        %734 = vmatpush2.msra.mxu0 0.0
        %735 = vmatprep.subr.mxu0 0.0
        %736 = vmatpush2.msra.mxu0 0.0
        %737 = vmatprep.mubr.f32.mxu0 0.0
        %738 = vmatmul.mubr.f32.gmra.mxu0 %v343
        %v739 = vpop.f32.mrf.mxu0
        %v740 = vadd.f32 %v319, %v739
        %v741 = vpop.f32.mrf.mxu0
        %v742 = vadd.f32 %v319, %v741
        %743 = vmatprep.mubr.f32.mxu0 0.0
        %744 = vmatmul.mubr.f32.gmra.mxu0 %v346
        %v745 = vpop.f32.mrf.mxu0
        %v746 = vadd.f32 %v324, %v745
        %v747 = vpop.f32.mrf.mxu0
        %v748 = vadd.f32 %v324, %v747
        %749 = vmatprep.mubr.f32.mxu0 0.0
        %750 = vmatmul.mubr.f32.gmra.mxu0 %v349
        %v751 = vpop.f32.mrf.mxu0
        %v752 = vadd.f32 %v329, %v751
        %v753 = vpop.f32.mrf.mxu0
        %v754 = vadd.f32 %v329, %v753
        %755 = vmatprep.mubr.f32.mxu0 0.0
        %756 = vmatmul.mubr.f32.gmra.mxu0 %v352
        %v757 = vpop.f32.mrf.mxu0
        %v758 = vadd.f32 %v334, %v757
        %v759 = vpop.f32.mrf.mxu0
        %v760 = vadd.f32 %v334, %v759
        %761 = vmatprep.mubr.f32.mxu0 0.0
        %762 = vmatmul.mubr.f32.gmra.mxu0 %v355
        %v763 = vpop.f32.mrf.mxu0
        %v764 = vadd.f32 %v339, %v763
        %v765 = vpop.f32.mrf.mxu0
        %v766 = vadd.f32 %v339, %v765
        %767 = vdwg.mxu0
        %768 = vmatprep.subr.mxu0 0.0
        %769 = vmatpush1.msra.mxu0 0.0
        %770 = vmatprep.subr.mxu0 0.0
        %771 = vmatpush1.msra.mxu0 0.0
        %772 = vmatprep.subr.mxu0 0.0
        %773 = vmatpush1.msra.mxu0 0.0
        %774 = vmatprep.subr.mxu0 0.0
        %775 = vmatpush1.msra.mxu0 0.0
        %776 = vmatprep.subr.mxu0 0.0
        %777 = vmatpush1.msra.mxu0 0.0
        %778 = vmatprep.subr.mxu0 %v386
        %779 = vmatpush1.msra.mxu0 %v383
        %780 = vmatprep.subr.mxu0 %v295
        %781 = vmatpush1.msra.mxu0 %v294
        %782 = vmatprep.subr.mxu0 %v285
        %783 = vmatpush1.msra.mxu0 %v284
        %784 = vmatprep.subr.mxu0 %v275
        %785 = vmatpush1.msra.mxu0 %v274
        %786 = vmatprep.subr.mxu0 %v265
        %787 = vmatpush1.msra.mxu0 %v264
        %788 = vmatprep.subr.mxu0 %v255
        %789 = vmatpush1.msra.mxu0 %v254
        %790 = vmatprep.subr.mxu0 %v245
        %791 = vmatpush1.msra.mxu0 %v244
        %792 = vmatprep.subr.mxu0 %v235
        %793 = vmatpush1.msra.mxu0 %v234
        %794 = vmatprep.subr.mxu0 %v225
        %795 = vmatpush1.msra.mxu0 %v224
        %796 = vmatprep.subr.mxu0 %v215
        %797 = vmatpush1.msra.mxu0 %v214
        %798 = vmatprep.subr.mxu0 %v205
        %799 = vmatpush1.msra.mxu0 %v204
        %800 = vmatprep.subr.mxu0 0.0
        %801 = vmatpush2.msra.mxu0 0.0
        %802 = vmatprep.subr.mxu0 0.0
        %803 = vmatpush2.msra.mxu0 0.0
        %804 = vmatprep.subr.mxu0 0.0
        %805 = vmatpush2.msra.mxu0 0.0
        %806 = vmatprep.subr.mxu0 0.0
        %807 = vmatpush2.msra.mxu0 0.0
        %808 = vmatprep.subr.mxu0 0.0
        %809 = vmatpush2.msra.mxu0 0.0
        %810 = vmatprep.subr.mxu0 0.0
        %811 = vmatpush2.msra.mxu0 0.0
        %812 = vmatprep.subr.mxu0 0.0
        %813 = vmatpush2.msra.mxu0 0.0
        %814 = vmatprep.subr.mxu0 0.0
        %815 = vmatpush2.msra.mxu0 0.0
        %816 = vmatprep.subr.mxu0 0.0
        %817 = vmatpush2.msra.mxu0 0.0
        %818 = vmatprep.subr.mxu0 0.0
        %819 = vmatpush2.msra.mxu0 0.0
        %820 = vmatprep.subr.mxu0 0.0
        %821 = vmatpush2.msra.mxu0 0.0
        %822 = vmatprep.subr.mxu0 0.0
        %823 = vmatpush2.msra.mxu0 0.0
        %824 = vmatprep.subr.mxu0 0.0
        %825 = vmatpush2.msra.mxu0 0.0
        %826 = vmatprep.subr.mxu0 0.0
        %827 = vmatpush2.msra.mxu0 0.0
        %828 = vmatprep.subr.mxu0 0.0
        %829 = vmatpush2.msra.mxu0 0.0
        %830 = vmatprep.subr.mxu0 0.0
        %831 = vmatpush2.msra.mxu0 0.0
        %832 = vmatprep.mubr.f32.mxu0 0.0
        %833 = vmatmul.mubr.f32.gmra.mxu0 %v343
        %v834 = vpop.f32.mrf.mxu0
        %v835 = vadd.f32 %v319, %v834
        %v836 = vpop.f32.mrf.mxu0
        %v837 = vadd.f32 %v319, %v836
        %838 = vmatprep.mubr.f32.mxu0 0.0
        %839 = vmatmul.mubr.f32.gmra.mxu0 %v346
        %v840 = vpop.f32.mrf.mxu0
        %v841 = vadd.f32 %v324, %v840
        %v842 = vpop.f32.mrf.mxu0
        %v843 = vadd.f32 %v324, %v842
        %844 = vmatprep.mubr.f32.mxu0 0.0
        %845 = vmatmul.mubr.f32.gmra.mxu0 %v349
        %v846 = vpop.f32.mrf.mxu0
        %v847 = vadd.f32 %v329, %v846
        %v848 = vpop.f32.mrf.mxu0
        %v849 = vadd.f32 %v329, %v848
        %850 = vmatprep.mubr.f32.mxu0 0.0
        %851 = vmatmul.mubr.f32.gmra.mxu0 %v352
        %v852 = vpop.f32.mrf.mxu0
        %v853 = vadd.f32 %v334, %v852
        %v854 = vpop.f32.mrf.mxu0
        %v855 = vadd.f32 %v334, %v854
        %856 = vmatprep.mubr.f32.mxu0 0.0
        %857 = vmatmul.mubr.f32.gmra.mxu0 %v355
        %v858 = vpop.f32.mrf.mxu0
        %v859 = vadd.f32 %v339, %v858
        %v860 = vpop.f32.mrf.mxu0
        %v861 = vadd.f32 %v339, %v860
        %862 = vdwg.mxu0
        %v863 = vld [vmem:[%s2] sm:$0xff]
        %v864 = vld [vmem:[%s2 + $0x8] sm:$0xff]
        %v865 = vld [vmem:[%s2 + $0x10] sm:$0xff]
        %v866 = vld [vmem:[%s2 + $0x18] sm:$0xff]
        %v867 = vld [vmem:[%s2 + $0x20] sm:$0xff]
        %v869 = vsel %vm341, %v863, 0
        %v872 = vsel %vm341, %v864, 0
        %v875 = vsel %vm341, %v865, 0
        %v878 = vsel %vm341, %v866, 0
        %v881 = vsel %vm341, %v867, 0
        %883 = vmatprep.subr.mxu0 0.0
        %884 = vmatpush1.msra.mxu0 0.0
        %885 = vmatprep.subr.mxu0 0.0
        %886 = vmatpush1.msra.mxu0 0.0
        %887 = vmatprep.subr.mxu0 0.0
        %888 = vmatpush1.msra.mxu0 0.0
        %889 = vmatprep.subr.mxu0 0.0
        %890 = vmatpush1.msra.mxu0 0.0
        %891 = vmatprep.subr.mxu0 0.0
        %892 = vmatpush1.msra.mxu0 0.0
        %893 = vmatprep.subr.mxu0 %v362
        %894 = vmatpush1.msra.mxu0 %v359
        %895 = vmatprep.subr.mxu0 %v287
        %896 = vmatpush1.msra.mxu0 %v286
        %897 = vmatprep.subr.mxu0 %v277
        %898 = vmatpush1.msra.mxu0 %v276
        %899 = vmatprep.subr.mxu0 %v267
        %900 = vmatpush1.msra.mxu0 %v266
        %901 = vmatprep.subr.mxu0 %v257
        %902 = vmatpush1.msra.mxu0 %v256
        %903 = vmatprep.subr.mxu0 %v247
        %904 = vmatpush1.msra.mxu0 %v246
        %905 = vmatprep.subr.mxu0 %v237
        %906 = vmatpush1.msra.mxu0 %v236
        %907 = vmatprep.subr.mxu0 %v227
        %908 = vmatpush1.msra.mxu0 %v226
        %909 = vmatprep.subr.mxu0 %v217
        %910 = vmatpush1.msra.mxu0 %v216
        %911 = vmatprep.subr.mxu0 %v207
        %912 = vmatpush1.msra.mxu0 %v206
        %913 = vmatprep.subr.mxu0 %v197
        %914 = vmatpush1.msra.mxu0 %v196
        %915 = vmatprep.subr.mxu0 0.0
        %916 = vmatpush2.msra.mxu0 0.0
        %917 = vmatprep.subr.mxu0 0.0
        %918 = vmatpush2.msra.mxu0 0.0
        %919 = vmatprep.subr.mxu0 0.0
        %920 = vmatpush2.msra.mxu0 0.0
        %921 = vmatprep.subr.mxu0 0.0
        %922 = vmatpush2.msra.mxu0 0.0
        %923 = vmatprep.subr.mxu0 0.0
        %924 = vmatpush2.msra.mxu0 0.0
        %925 = vmatprep.subr.mxu0 0.0
        %926 = vmatpush2.msra.mxu0 0.0
        %927 = vmatprep.subr.mxu0 0.0
        %928 = vmatpush2.msra.mxu0 0.0
        %929 = vmatprep.subr.mxu0 0.0
        %930 = vmatpush2.msra.mxu0 0.0
        %931 = vmatprep.subr.mxu0 0.0
        %932 = vmatpush2.msra.mxu0 0.0
        %933 = vmatprep.subr.mxu0 0.0
        %934 = vmatpush2.msra.mxu0 0.0
        %935 = vmatprep.subr.mxu0 0.0
        %936 = vmatpush2.msra.mxu0 0.0
        %937 = vmatprep.subr.mxu0 0.0
        %938 = vmatpush2.msra.mxu0 0.0
        %939 = vmatprep.subr.mxu0 0.0
        %940 = vmatpush2.msra.mxu0 0.0
        %941 = vmatprep.subr.mxu0 0.0
        %942 = vmatpush2.msra.mxu0 0.0
        %943 = vmatprep.subr.mxu0 0.0
        %944 = vmatpush2.msra.mxu0 0.0
        %945 = vmatprep.subr.mxu0 0.0
        %946 = vmatpush2.msra.mxu0 0.0
        %947 = vmatprep.mubr.f32.mxu0 0.0
        %948 = vmatmul.mubr.f32.gmra.mxu0 %v869
        %v949 = vpop.f32.mrf.mxu0
        %v950 = vadd.f32 %v319, %v949
        %v951 = vpop.f32.mrf.mxu0
        %v952 = vadd.f32 %v319, %v951
        %953 = vmatprep.mubr.f32.mxu0 0.0
        %954 = vmatmul.mubr.f32.gmra.mxu0 %v872
        %v955 = vpop.f32.mrf.mxu0
        %v956 = vadd.f32 %v324, %v955
        %v957 = vpop.f32.mrf.mxu0
        %v958 = vadd.f32 %v324, %v957
        %959 = vmatprep.mubr.f32.mxu0 0.0
        %960 = vmatmul.mubr.f32.gmra.mxu0 %v875
        %v961 = vpop.f32.mrf.mxu0
        %v962 = vadd.f32 %v329, %v961
        %v963 = vpop.f32.mrf.mxu0
        %v964 = vadd.f32 %v329, %v963
        %965 = vmatprep.mubr.f32.mxu0 0.0
        %966 = vmatmul.mubr.f32.gmra.mxu0 %v878
        %v967 = vpop.f32.mrf.mxu0
        %v968 = vadd.f32 %v334, %v967
        %v969 = vpop.f32.mrf.mxu0
        %v970 = vadd.f32 %v334, %v969
        %971 = vmatprep.mubr.f32.mxu0 0.0
        %972 = vmatmul.mubr.f32.gmra.mxu0 %v881
        %v973 = vpop.f32.mrf.mxu0
        %v974 = vadd.f32 %v339, %v973
        %v975 = vpop.f32.mrf.mxu0
        %v976 = vadd.f32 %v339, %v975
        %977 = vdwg.mxu0
        %978 = vmatprep.subr.mxu0 0.0
        %979 = vmatpush1.msra.mxu0 0.0
        %980 = vmatprep.subr.mxu0 0.0
        %981 = vmatpush1.msra.mxu0 0.0
        %982 = vmatprep.subr.mxu0 0.0
        %983 = vmatpush1.msra.mxu0 0.0
        %984 = vmatprep.subr.mxu0 0.0
        %985 = vmatpush1.msra.mxu0 0.0
        %986 = vmatprep.subr.mxu0 0.0
        %987 = vmatpush1.msra.mxu0 0.0
        %988 = vmatprep.subr.mxu0 %v368
        %989 = vmatpush1.msra.mxu0 %v365
        %990 = vmatprep.subr.mxu0 %v289
        %991 = vmatpush1.msra.mxu0 %v288
        %992 = vmatprep.subr.mxu0 %v279
        %993 = vmatpush1.msra.mxu0 %v278
        %994 = vmatprep.subr.mxu0 %v269
        %995 = vmatpush1.msra.mxu0 %v268
        %996 = vmatprep.subr.mxu0 %v259
        %997 = vmatpush1.msra.mxu0 %v258
        %998 = vmatprep.subr.mxu0 %v249
        %999 = vmatpush1.msra.mxu0 %v248
        %1000 = vmatprep.subr.mxu0 %v239
        %1001 = vmatpush1.msra.mxu0 %v238
        %1002 = vmatprep.subr.mxu0 %v229
        %1003 = vmatpush1.msra.mxu0 %v228
        %1004 = vmatprep.subr.mxu0 %v219
        %1005 = vmatpush1.msra.mxu0 %v218
        %1006 = vmatprep.subr.mxu0 %v209
        %1007 = vmatpush1.msra.mxu0 %v208
        %1008 = vmatprep.subr.mxu0 %v199
        %1009 = vmatpush1.msra.mxu0 %v198
        %1010 = vmatprep.subr.mxu0 0.0
        %1011 = vmatpush2.msra.mxu0 0.0
        %1012 = vmatprep.subr.mxu0 0.0
        %1013 = vmatpush2.msra.mxu0 0.0
        %1014 = vmatprep.subr.mxu0 0.0
        %1015 = vmatpush2.msra.mxu0 0.0
        %1016 = vmatprep.subr.mxu0 0.0
        %1017 = vmatpush2.msra.mxu0 0.0
        %1018 = vmatprep.subr.mxu0 0.0
        %1019 = vmatpush2.msra.mxu0 0.0
        %1020 = vmatprep.subr.mxu0 0.0
        %1021 = vmatpush2.msra.mxu0 0.0
        %1022 = vmatprep.subr.mxu0 0.0
        %1023 = vmatpush2.msra.mxu0 0.0
        %1024 = vmatprep.subr.mxu0 0.0
        %1025 = vmatpush2.msra.mxu0 0.0
        %1026 = vmatprep.subr.mxu0 0.0
        %1027 = vmatpush2.msra.mxu0 0.0
        %1028 = vmatprep.subr.mxu0 0.0
        %1029 = vmatpush2.msra.mxu0 0.0
        %1030 = vmatprep.subr.mxu0 0.0
        %1031 = vmatpush2.msra.mxu0 0.0
        %1032 = vmatprep.subr.mxu0 0.0
        %1033 = vmatpush2.msra.mxu0 0.0
        %1034 = vmatprep.subr.mxu0 0.0
        %1035 = vmatpush2.msra.mxu0 0.0
        %1036 = vmatprep.subr.mxu0 0.0
        %1037 = vmatpush2.msra.mxu0 0.0
        %1038 = vmatprep.subr.mxu0 0.0
        %1039 = vmatpush2.msra.mxu0 0.0
        %1040 = vmatprep.subr.mxu0 0.0
        %1041 = vmatpush2.msra.mxu0 0.0
        %1042 = vmatprep.mubr.f32.mxu0 0.0
        %1043 = vmatmul.mubr.f32.gmra.mxu0 %v869
        %v1044 = vpop.f32.mrf.mxu0
        %v1045 = vadd.f32 %v319, %v1044
        %v1046 = vpop.f32.mrf.mxu0
        %v1047 = vadd.f32 %v319, %v1046
        %1048 = vmatprep.mubr.f32.mxu0 0.0
        %1049 = vmatmul.mubr.f32.gmra.mxu0 %v872
        %v1050 = vpop.f32.mrf.mxu0
        %v1051 = vadd.f32 %v324, %v1050
        %v1052 = vpop.f32.mrf.mxu0
        %v1053 = vadd.f32 %v324, %v1052
        %1054 = vmatprep.mubr.f32.mxu0 0.0
        %1055 = vmatmul.mubr.f32.gmra.mxu0 %v875
        %v1056 = vpop.f32.mrf.mxu0
        %v1057 = vadd.f32 %v329, %v1056
        %v1058 = vpop.f32.mrf.mxu0
        %v1059 = vadd.f32 %v329, %v1058
        %1060 = vmatprep.mubr.f32.mxu0 0.0
        %1061 = vmatmul.mubr.f32.gmra.mxu0 %v878
        %v1062 = vpop.f32.mrf.mxu0
        %v1063 = vadd.f32 %v334, %v1062
        %v1064 = vpop.f32.mrf.mxu0
        %v1065 = vadd.f32 %v334, %v1064
        %1066 = vmatprep.mubr.f32.mxu0 0.0
        %1067 = vmatmul.mubr.f32.gmra.mxu0 %v881
        %v1068 = vpop.f32.mrf.mxu0
        %v1069 = vadd.f32 %v339, %v1068
        %v1070 = vpop.f32.mrf.mxu0
        %v1071 = vadd.f32 %v339, %v1070
        %1072 = vdwg.mxu0
        %1073 = vmatprep.subr.mxu0 0.0
        %1074 = vmatpush1.msra.mxu0 0.0
        %1075 = vmatprep.subr.mxu0 0.0
        %1076 = vmatpush1.msra.mxu0 0.0
        %1077 = vmatprep.subr.mxu0 0.0
        %1078 = vmatpush1.msra.mxu0 0.0
        %1079 = vmatprep.subr.mxu0 0.0
        %1080 = vmatpush1.msra.mxu0 0.0
        %1081 = vmatprep.subr.mxu0 0.0
        %1082 = vmatpush1.msra.mxu0 0.0
        %1083 = vmatprep.subr.mxu0 %v374
        %1084 = vmatpush1.msra.mxu0 %v371
        %1085 = vmatprep.subr.mxu0 %v291
        %1086 = vmatpush1.msra.mxu0 %v290
        %1087 = vmatprep.subr.mxu0 %v281
        %1088 = vmatpush1.msra.mxu0 %v280
        %1089 = vmatprep.subr.mxu0 %v271
        %1090 = vmatpush1.msra.mxu0 %v270
        %1091 = vmatprep.subr.mxu0 %v261
        %1092 = vmatpush1.msra.mxu0 %v260
        %1093 = vmatprep.subr.mxu0 %v251
        %1094 = vmatpush1.msra.mxu0 %v250
        %1095 = vmatprep.subr.mxu0 %v241
        %1096 = vmatpush1.msra.mxu0 %v240
        %1097 = vmatprep.subr.mxu0 %v231
        %1098 = vmatpush1.msra.mxu0 %v230
        %1099 = vmatprep.subr.mxu0 %v221
        %1100 = vmatpush1.msra.mxu0 %v220
        %1101 = vmatprep.subr.mxu0 %v211
        %1102 = vmatpush1.msra.mxu0 %v210
        %1103 = vmatprep.subr.mxu0 %v201
        %1104 = vmatpush1.msra.mxu0 %v200
        %1105 = vmatprep.subr.mxu0 0.0
        %1106 = vmatpush2.msra.mxu0 0.0
        %1107 = vmatprep.subr.mxu0 0.0
        %1108 = vmatpush2.msra.mxu0 0.0
        %1109 = vmatprep.subr.mxu0 0.0
        %1110 = vmatpush2.msra.mxu0 0.0
        %1111 = vmatprep.subr.mxu0 0.0
        %1112 = vmatpush2.msra.mxu0 0.0
        %1113 = vmatprep.subr.mxu0 0.0
        %1114 = vmatpush2.msra.mxu0 0.0
        %1115 = vmatprep.subr.mxu0 0.0
        %1116 = vmatpush2.msra.mxu0 0.0
        %1117 = vmatprep.subr.mxu0 0.0
        %1118 = vmatpush2.msra.mxu0 0.0
        %1119 = vmatprep.subr.mxu0 0.0
        %1120 = vmatpush2.msra.mxu0 0.0
        %1121 = vmatprep.subr.mxu0 0.0
        %1122 = vmatpush2.msra.mxu0 0.0
        %1123 = vmatprep.subr.mxu0 0.0
        %1124 = vmatpush2.msra.mxu0 0.0
        %1125 = vmatprep.subr.mxu0 0.0
        %1126 = vmatpush2.msra.mxu0 0.0
        %1127 = vmatprep.subr.mxu0 0.0
        %1128 = vmatpush2.msra.mxu0 0.0
        %1129 = vmatprep.subr.mxu0 0.0
        %1130 = vmatpush2.msra.mxu0 0.0
        %1131 = vmatprep.subr.mxu0 0.0
        %1132 = vmatpush2.msra.mxu0 0.0
        %1133 = vmatprep.subr.mxu0 0.0
        %1134 = vmatpush2.msra.mxu0 0.0
        %1135 = vmatprep.subr.mxu0 0.0
        %1136 = vmatpush2.msra.mxu0 0.0
        %1137 = vmatprep.mubr.f32.mxu0 0.0
        %1138 = vmatmul.mubr.f32.gmra.mxu0 %v869
        %v1139 = vpop.f32.mrf.mxu0
        %v1140 = vadd.f32 %v319, %v1139
        %v1141 = vpop.f32.mrf.mxu0
        %v1142 = vadd.f32 %v319, %v1141
        %1143 = vmatprep.mubr.f32.mxu0 0.0
        %1144 = vmatmul.mubr.f32.gmra.mxu0 %v872
        %v1145 = vpop.f32.mrf.mxu0
        %v1146 = vadd.f32 %v324, %v1145
        %v1147 = vpop.f32.mrf.mxu0
        %v1148 = vadd.f32 %v324, %v1147
        %1149 = vmatprep.mubr.f32.mxu0 0.0
        %1150 = vmatmul.mubr.f32.gmra.mxu0 %v875
        %v1151 = vpop.f32.mrf.mxu0
        %v1152 = vadd.f32 %v329, %v1151
        %v1153 = vpop.f32.mrf.mxu0
        %v1154 = vadd.f32 %v329, %v1153
        %1155 = vmatprep.mubr.f32.mxu0 0.0
        %1156 = vmatmul.mubr.f32.gmra.mxu0 %v878
        %v1157 = vpop.f32.mrf.mxu0
        %v1158 = vadd.f32 %v334, %v1157
        %v1159 = vpop.f32.mrf.mxu0
        %v1160 = vadd.f32 %v334, %v1159
        %1161 = vmatprep.mubr.f32.mxu0 0.0
        %1162 = vmatmul.mubr.f32.gmra.mxu0 %v881
        %v1163 = vpop.f32.mrf.mxu0
        %v1164 = vadd.f32 %v339, %v1163
        %v1165 = vpop.f32.mrf.mxu0
        %v1166 = vadd.f32 %v339, %v1165
        %1167 = vdwg.mxu0
        %1168 = vmatprep.subr.mxu0 0.0
        %1169 = vmatpush1.msra.mxu0 0.0
        %1170 = vmatprep.subr.mxu0 0.0
        %1171 = vmatpush1.msra.mxu0 0.0
        %1172 = vmatprep.subr.mxu0 0.0
        %1173 = vmatpush1.msra.mxu0 0.0
        %1174 = vmatprep.subr.mxu0 0.0
        %1175 = vmatpush1.msra.mxu0 0.0
        %1176 = vmatprep.subr.mxu0 0.0
        %1177 = vmatpush1.msra.mxu0 0.0
        %1178 = vmatprep.subr.mxu0 %v380
        %1179 = vmatpush1.msra.mxu0 %v377
        %1180 = vmatprep.subr.mxu0 %v293
        %1181 = vmatpush1.msra.mxu0 %v292
        %1182 = vmatprep.subr.mxu0 %v283
        %1183 = vmatpush1.msra.mxu0 %v282
        %1184 = vmatprep.subr.mxu0 %v273
        %1185 = vmatpush1.msra.mxu0 %v272
        %1186 = vmatprep.subr.mxu0 %v263
        %1187 = vmatpush1.msra.mxu0 %v262
        %1188 = vmatprep.subr.mxu0 %v253
        %1189 = vmatpush1.msra.mxu0 %v252
        %1190 = vmatprep.subr.mxu0 %v243
        %1191 = vmatpush1.msra.mxu0 %v242
        %1192 = vmatprep.subr.mxu0 %v233
        %1193 = vmatpush1.msra.mxu0 %v232
        %1194 = vmatprep.subr.mxu0 %v223
        %1195 = vmatpush1.msra.mxu0 %v222
        %1196 = vmatprep.subr.mxu0 %v213
        %1197 = vmatpush1.msra.mxu0 %v212
        %1198 = vmatprep.subr.mxu0 %v203
        %1199 = vmatpush1.msra.mxu0 %v202
        %1200 = vmatprep.subr.mxu0 0.0
        %1201 = vmatpush2.msra.mxu0 0.0
        %1202 = vmatprep.subr.mxu0 0.0
        %1203 = vmatpush2.msra.mxu0 0.0
        %1204 = vmatprep.subr.mxu0 0.0
        %1205 = vmatpush2.msra.mxu0 0.0
        %1206 = vmatprep.subr.mxu0 0.0
        %1207 = vmatpush2.msra.mxu0 0.0
        %1208 = vmatprep.subr.mxu0 0.0
        %1209 = vmatpush2.msra.mxu0 0.0
        %1210 = vmatprep.subr.mxu0 0.0
        %1211 = vmatpush2.msra.mxu0 0.0
        %1212 = vmatprep.subr.mxu0 0.0
        %1213 = vmatpush2.msra.mxu0 0.0
        %1214 = vmatprep.subr.mxu0 0.0
        %1215 = vmatpush2.msra.mxu0 0.0
        %1216 = vmatprep.subr.mxu0 0.0
        %1217 = vmatpush2.msra.mxu0 0.0
        %1218 = vmatprep.subr.mxu0 0.0
        %1219 = vmatpush2.msra.mxu0 0.0
        %1220 = vmatprep.subr.mxu0 0.0
        %1221 = vmatpush2.msra.mxu0 0.0
        %1222 = vmatprep.subr.mxu0 0.0
        %1223 = vmatpush2.msra.mxu0 0.0
        %1224 = vmatprep.subr.mxu0 0.0
        %1225 = vmatpush2.msra.mxu0 0.0
        %1226 = vmatprep.subr.mxu0 0.0
        %1227 = vmatpush2.msra.mxu0 0.0
        %1228 = vmatprep.subr.mxu0 0.0
        %1229 = vmatpush2.msra.mxu0 0.0
        %1230 = vmatprep.subr.mxu0 0.0
        %1231 = vmatpush2.msra.mxu0 0.0
        %1232 = vmatprep.mubr.f32.mxu0 0.0
        %1233 = vmatmul.mubr.f32.gmra.mxu0 %v869
        %v1234 = vpop.f32.mrf.mxu0
        %v1235 = vadd.f32 %v319, %v1234
        %v1236 = vpop.f32.mrf.mxu0
        %v1237 = vadd.f32 %v319, %v1236
        %1238 = vmatprep.mubr.f32.mxu0 0.0
        %1239 = vmatmul.mubr.f32.gmra.mxu0 %v872
        %v1240 = vpop.f32.mrf.mxu0
        %v1241 = vadd.f32 %v324, %v1240
        %v1242 = vpop.f32.mrf.mxu0
        %v1243 = vadd.f32 %v324, %v1242
        %1244 = vmatprep.mubr.f32.mxu0 0.0
        %1245 = vmatmul.mubr.f32.gmra.mxu0 %v875
        %v1246 = vpop.f32.mrf.mxu0
        %v1247 = vadd.f32 %v329, %v1246
        %v1248 = vpop.f32.mrf.mxu0
        %v1249 = vadd.f32 %v329, %v1248
        %1250 = vmatprep.mubr.f32.mxu0 0.0
        %1251 = vmatmul.mubr.f32.gmra.mxu0 %v878
        %v1252 = vpop.f32.mrf.mxu0
        %v1253 = vadd.f32 %v334, %v1252
        %v1254 = vpop.f32.mrf.mxu0
        %v1255 = vadd.f32 %v334, %v1254
        %1256 = vmatprep.mubr.f32.mxu0 0.0
        %1257 = vmatmul.mubr.f32.gmra.mxu0 %v881
        %v1258 = vpop.f32.mrf.mxu0
        %v1259 = vadd.f32 %v339, %v1258
        %v1260 = vpop.f32.mrf.mxu0
        %v1261 = vadd.f32 %v339, %v1260
        %1262 = vdwg.mxu0
        %1263 = vmatprep.subr.mxu0 0.0
        %1264 = vmatpush1.msra.mxu0 0.0
        %1265 = vmatprep.subr.mxu0 0.0
        %1266 = vmatpush1.msra.mxu0 0.0
        %1267 = vmatprep.subr.mxu0 0.0
        %1268 = vmatpush1.msra.mxu0 0.0
        %1269 = vmatprep.subr.mxu0 0.0
        %1270 = vmatpush1.msra.mxu0 0.0
        %1271 = vmatprep.subr.mxu0 0.0
        %1272 = vmatpush1.msra.mxu0 0.0
        %1273 = vmatprep.subr.mxu0 %v386
        %1274 = vmatpush1.msra.mxu0 %v383
        %1275 = vmatprep.subr.mxu0 %v295
        %1276 = vmatpush1.msra.mxu0 %v294
        %1277 = vmatprep.subr.mxu0 %v285
        %1278 = vmatpush1.msra.mxu0 %v284
        %1279 = vmatprep.subr.mxu0 %v275
        %1280 = vmatpush1.msra.mxu0 %v274
        %1281 = vmatprep.subr.mxu0 %v265
        %1282 = vmatpush1.msra.mxu0 %v264
        %1283 = vmatprep.subr.mxu0 %v255
        %1284 = vmatpush1.msra.mxu0 %v254
        %1285 = vmatprep.subr.mxu0 %v245
        %1286 = vmatpush1.msra.mxu0 %v244
        %1287 = vmatprep.subr.mxu0 %v235
        %1288 = vmatpush1.msra.mxu0 %v234
        %1289 = vmatprep.subr.mxu0 %v225
        %1290 = vmatpush1.msra.mxu0 %v224
        %1291 = vmatprep.subr.mxu0 %v215
        %1292 = vmatpush1.msra.mxu0 %v214
        %1293 = vmatprep.subr.mxu0 %v205
        %1294 = vmatpush1.msra.mxu0 %v204
        %1295 = vmatprep.subr.mxu0 0.0
        %1296 = vmatpush2.msra.mxu0 0.0
        %1297 = vmatprep.subr.mxu0 0.0
        %1298 = vmatpush2.msra.mxu0 0.0
        %1299 = vmatprep.subr.mxu0 0.0
        %1300 = vmatpush2.msra.mxu0 0.0
        %1301 = vmatprep.subr.mxu0 0.0
        %1302 = vmatpush2.msra.mxu0 0.0
        %1303 = vmatprep.subr.mxu0 0.0
        %1304 = vmatpush2.msra.mxu0 0.0
        %1305 = vmatprep.subr.mxu0 0.0
        %1306 = vmatpush2.msra.mxu0 0.0
        %1307 = vmatprep.subr.mxu0 0.0
        %1308 = vmatpush2.msra.mxu0 0.0
        %1309 = vmatprep.subr.mxu0 0.0
        %1310 = vmatpush2.msra.mxu0 0.0
        %1311 = vmatprep.subr.mxu0 0.0
        %1312 = vmatpush2.msra.mxu0 0.0
        %1313 = vmatprep.subr.mxu0 0.0
        %1314 = vmatpush2.msra.mxu0 0.0
        %1315 = vmatprep.subr.mxu0 0.0
        %1316 = vmatpush2.msra.mxu0 0.0
        %1317 = vmatprep.subr.mxu0 0.0
        %1318 = vmatpush2.msra.mxu0 0.0
        %1319 = vmatprep.subr.mxu0 0.0
        %1320 = vmatpush2.msra.mxu0 0.0
        %1321 = vmatprep.subr.mxu0 0.0
        %1322 = vmatpush2.msra.mxu0 0.0
        %1323 = vmatprep.subr.mxu0 0.0
        %1324 = vmatpush2.msra.mxu0 0.0
        %1325 = vmatprep.subr.mxu0 0.0
        %1326 = vmatpush2.msra.mxu0 0.0
        %1327 = vmatprep.mubr.f32.mxu0 0.0
        %1328 = vmatmul.mubr.f32.gmra.mxu0 %v869
        %v1329 = vpop.f32.mrf.mxu0
        %v1330 = vadd.f32 %v319, %v1329
        %v1331 = vpop.f32.mrf.mxu0
        %v1332 = vadd.f32 %v319, %v1331
        %1333 = vmatprep.mubr.f32.mxu0 0.0
        %1334 = vmatmul.mubr.f32.gmra.mxu0 %v872
        %v1335 = vpop.f32.mrf.mxu0
        %v1336 = vadd.f32 %v324, %v1335
        %v1337 = vpop.f32.mrf.mxu0
        %v1338 = vadd.f32 %v324, %v1337
        %1339 = vmatprep.mubr.f32.mxu0 0.0
        %1340 = vmatmul.mubr.f32.gmra.mxu0 %v875
        %v1341 = vpop.f32.mrf.mxu0
        %v1342 = vadd.f32 %v329, %v1341
        %v1343 = vpop.f32.mrf.mxu0
        %v1344 = vadd.f32 %v329, %v1343
        %1345 = vmatprep.mubr.f32.mxu0 0.0
        %1346 = vmatmul.mubr.f32.gmra.mxu0 %v878
        %v1347 = vpop.f32.mrf.mxu0
        %v1348 = vadd.f32 %v334, %v1347
        %v1349 = vpop.f32.mrf.mxu0
        %v1350 = vadd.f32 %v334, %v1349
        %1351 = vmatprep.mubr.f32.mxu0 0.0
        %1352 = vmatmul.mubr.f32.gmra.mxu0 %v881
        %v1353 = vpop.f32.mrf.mxu0
        %v1354 = vadd.f32 %v339, %v1353
        %v1355 = vpop.f32.mrf.mxu0
        %v1356 = vadd.f32 %v339, %v1355
        %1357 = vdwg.mxu0
        %v1358 = vmax.f32 %v455, %v950
        %v1359 = vmax.f32 %v457, %v952
        %v1360 = vmax.f32 %v550, %v1045
        %v1361 = vmax.f32 %v552, %v1047
        %v1362 = vmax.f32 %v645, %v1140
        %v1363 = vmax.f32 %v647, %v1142
        %v1364 = vmax.f32 %v740, %v1235
        %v1365 = vmax.f32 %v742, %v1237
        %v1366 = vmax.f32 %v835, %v1330
        %v1367 = vmax.f32 %v837, %v1332
        %v1368 = vmax.f32 %v461, %v956
        %v1369 = vmax.f32 %v463, %v958
        %v1370 = vmax.f32 %v556, %v1051
        %v1371 = vmax.f32 %v558, %v1053
        %v1372 = vmax.f32 %v651, %v1146
        %v1373 = vmax.f32 %v653, %v1148
        %v1374 = vmax.f32 %v746, %v1241
        %v1375 = vmax.f32 %v748, %v1243
        %v1376 = vmax.f32 %v841, %v1336
        %v1377 = vmax.f32 %v843, %v1338
        %v1378 = vmax.f32 %v467, %v962
        %v1379 = vmax.f32 %v469, %v964
        %v1380 = vmax.f32 %v562, %v1057
        %v1381 = vmax.f32 %v564, %v1059
        %v1382 = vmax.f32 %v657, %v1152
        %v1383 = vmax.f32 %v659, %v1154
        %v1384 = vmax.f32 %v752, %v1247
        %v1385 = vmax.f32 %v754, %v1249
        %v1386 = vmax.f32 %v847, %v1342
        %v1387 = vmax.f32 %v849, %v1344
        %v1388 = vmax.f32 %v473, %v968
        %v1389 = vmax.f32 %v475, %v970
        %v1390 = vmax.f32 %v568, %v1063
        %v1391 = vmax.f32 %v570, %v1065
        %v1392 = vmax.f32 %v663, %v1158
        %v1393 = vmax.f32 %v665, %v1160
        %v1394 = vmax.f32 %v758, %v1253
        %v1395 = vmax.f32 %v760, %v1255
        %v1396 = vmax.f32 %v853, %v1348
        %v1397 = vmax.f32 %v855, %v1350
        %v1398 = vmax.f32 %v479, %v974
        %v1399 = vmax.f32 %v481, %v976
        %v1400 = vmax.f32 %v574, %v1069
        %v1401 = vmax.f32 %v576, %v1071
        %v1402 = vmax.f32 %v669, %v1164
        %v1403 = vmax.f32 %v671, %v1166
        %v1404 = vmax.f32 %v764, %v1259
        %v1405 = vmax.f32 %v766, %v1261
        %v1406 = vmax.f32 %v859, %v1354
        %v1407 = vmax.f32 %v861, %v1356
        %1408 = vst [vmem:[%s190] sm:$0xff] %v1358
        %1409 = vst [vmem:[%s190 + $0x8] sm:$0xff] %v1359
        %1410 = vst [vmem:[%s190 + $0x10] sm:$0xff] %v1360
        %1411 = vst [vmem:[%s190 + $0x18] sm:$0xff] %v1361
        %1412 = vst [vmem:[%s190 + $0x20] sm:$0xff] %v1362
        %1413 = vst [vmem:[%s190 + $0x28] sm:$0xff] %v1363
        %1414 = vst [vmem:[%s190 + $0x30] sm:$0xff] %v1364
        %1415 = vst [vmem:[%s190 + $0x38] sm:$0xff] %v1365
        %1416 = vst [vmem:[%s190 + $0x40] sm:$0xff] %v1366
        %1417 = vst [vmem:[%s190 + $0x48] sm:$0xff] %v1367
        %1418 = vst [vmem:[%s190 + $0x50] sm:$0xff] %v1368
        %1419 = vst [vmem:[%s190 + $0x58] sm:$0xff] %v1369
        %1420 = vst [vmem:[%s190 + $0x60] sm:$0xff] %v1370
        %1421 = vst [vmem:[%s190 + $0x68] sm:$0xff] %v1371
        %1422 = vst [vmem:[%s190 + $0x70] sm:$0xff] %v1372
        %1423 = vst [vmem:[%s190 + $0x78] sm:$0xff] %v1373
        %1424 = vst [vmem:[%s190 + $0x80] sm:$0xff] %v1374
        %1425 = vst [vmem:[%s190 + $0x88] sm:$0xff] %v1375
        %1426 = vst [vmem:[%s190 + $0x90] sm:$0xff] %v1376
        %1427 = vst [vmem:[%s190 + $0x98] sm:$0xff] %v1377
        %1428 = vst [vmem:[%s190 + $0xa0] sm:$0xff] %v1378
        %1429 = vst [vmem:[%s190 + $0xa8] sm:$0xff] %v1379
        %1430 = vst [vmem:[%s190 + $0xb0] sm:$0xff] %v1380
        %1431 = vst [vmem:[%s190 + $0xb8] sm:$0xff] %v1381
        %1432 = vst [vmem:[%s190 + $0xc0] sm:$0xff] %v1382
        %1433 = vst [vmem:[%s190 + $0xc8] sm:$0xff] %v1383
        %1434 = vst [vmem:[%s190 + $0xd0] sm:$0xff] %v1384
        %1435 = vst [vmem:[%s190 + $0xd8] sm:$0xff] %v1385
        %1436 = vst [vmem:[%s190 + $0xe0] sm:$0xff] %v1386
        %1437 = vst [vmem:[%s190 + $0xe8] sm:$0xff] %v1387
        %1438 = vst [vmem:[%s190 + $0xf0] sm:$0xff] %v1388
        %1439 = vst [vmem:[%s190 + $0xf8] sm:$0xff] %v1389
        %1440 = vst [vmem:[%s190 + $0x100] sm:$0xff] %v1390
        %1441 = vst [vmem:[%s190 + $0x108] sm:$0xff] %v1391
        %1442 = vst [vmem:[%s190 + $0x110] sm:$0xff] %v1392
        %1443 = vst [vmem:[%s190 + $0x118] sm:$0xff] %v1393
        %1444 = vst [vmem:[%s190 + $0x120] sm:$0xff] %v1394
        %1445 = vst [vmem:[%s190 + $0x128] sm:$0xff] %v1395
        %1446 = vst [vmem:[%s190 + $0x130] sm:$0xff] %v1396
        %1447 = vst [vmem:[%s190 + $0x138] sm:$0xff] %v1397
        %1448 = vst [vmem:[%s190 + $0x140] sm:$0xff] %v1398
        %1449 = vst [vmem:[%s190 + $0x148] sm:$0xff] %v1399
        %1450 = vst [vmem:[%s190 + $0x150] sm:$0xff] %v1400
        %1451 = vst [vmem:[%s190 + $0x158] sm:$0xff] %v1401
        %1452 = vst [vmem:[%s190 + $0x160] sm:$0xff] %v1402
        %1453 = vst [vmem:[%s190 + $0x168] sm:$0xff] %v1403
        %1454 = vst [vmem:[%s190 + $0x170] sm:$0xff] %v1404
        %1455 = vst [vmem:[%s190 + $0x178] sm:$0xff] %v1405
        %1456 = vst [vmem:[%s190 + $0x180] sm:$0xff] %v1406
        %1457 = vst [vmem:[%s190 + $0x188] sm:$0xff] %v1407
        %s1458 = sand.u32 %s115, 1
        %s1459 = scalar_lea.sflag [#allocation3], %s1458
        %s1460 = sand.u32 %s115, 1
        %s1461 = smul.addr %s1460, 400
        %s1462 = scalar_lea.vmem [#allocation2], %s1461
        // Predicated region
        $region37: #{tpu_custom_call.1} parent=35 // pred_check
          %p1463 = pneg %p125
        $region38: #{tpu_custom_call.1} parent=35 // pred_check_branch
          %1465 = sbr.rel (%p1463) target = $region40
        $region39: #{tpu_custom_call.1} parent=35 // pred_region
          %s1467 = ssub.s32 6400, 6400
          %1468 = vsyncadd %s1459, %s1467
          %s1469 = smul.addr %s18, 50
          %s1470 = smul.addr %s1469, 128
          %s1471 = scalar_lea.hbm %s4, %s1470
          %s1472 = sshll.u32 %s1462, 4
          %s1473 = int_to_ptr.vmem [resolvable:$true] %s1472
          %1478 = dma.vmem_to_hbm [thread:$0]  %s1473, 6400, %s1471, %s1459, 1280, 1280, 80
        $region40: #{tpu_custom_call.1} parent=35 // pred_fallthru
          _
      $region36: #{tpu_custom_call.1} parent=5 // pred_fallthru
        _
      %p1479 = scmp.le.s32.totalorder 2, %s13
      // Predicated region
      $region41: #{tpu_custom_call.1} parent=5 // pred_check
        %p1480 = pneg %p1479
      $region42: #{tpu_custom_call.1} parent=5 // pred_check_branch
        %1482 = sbr.rel (%p1480) target = $region44
      $region43: #{tpu_custom_call.1} parent=5 // pred_region
        %s1483 = ssub.s32 %s13, 2
        // Predicated region
        $region45: #{tpu_custom_call.1} parent=43 // pred_check
          %p1484 = pneg %p131
        $region46: #{tpu_custom_call.1} parent=43 // pred_check_branch
          %1486 = sbr.rel (%p1484) target = $region48
        $region47: #{tpu_custom_call.1} parent=43 // pred_region
          %s1487 = sand.u32 %s116, 1
          %s1488 = scalar_lea.sflag [#allocation3], %s1487
          %s1489 = sand.u32 %s116, 1
          %s1490 = smul.addr %s1489, 400
          %s1491 = scalar_lea.vmem [#allocation2], %s1490
          %1492 = dma.done %s1488, 6400
        $region48: #{tpu_custom_call.1} parent=43 // pred_fallthru
          _
      $region44: #{tpu_custom_call.1} parent=5 // pred_fallthru
        _
    $region6: #{tpu_custom_call.1} parent=1 // loop_footer
      %s17 = sadd.s32 1, %s13
    $region7: #{tpu_custom_call.1} parent=1 // loop_footer_branch
      %12 = sbr.rel target = $region3
    $region8: #{tpu_custom_call.1} parent=1 // loop_exit
      _
    %1493 = vsyncpa [#allocation3], 1
    %s1494 = scalar_lea.sflag [#allocation3], 1
    %1495 = vsyncpa %s1494, 1

</llo_original>
